<compile_context>
chip_gen: v6e
topology: v6e:2x2x1
jax: 0.10.0
libtpu: 0.0.40
codegen_flags: <defaults>
</compile_context>

<pallas_src>
import functools

import jax
import jax.numpy as jnp
from jax.experimental import pallas as pl
from jax.experimental.pallas import tpu as pltpu


def word2vec_kernel(emb_ref, w1_ref, b1_ref, w2_ref, b2_ref,
                    fc1w_ref, fc1b_ref, fc2w_ref, fc2b_ref, out_ref):
    x = emb_ref[...]                                   # (TB, L, E) f32
    TB, L, _ = x.shape

    def conv1d_relu(x_in, w_ref, b_ref):
        # x_in: (TB, T, Cin) f32; w_ref: (3*Cin, Cout) bf16; b_ref: (1, Cout) f32
        # Conv1d(k=3, padding=1): out[t] = [x[t-1] | x[t] | x[t+1]] @ W_fused
        TBq, T, Cin = x_in.shape
        zero = jnp.zeros((TBq, 1, Cin), dtype=x_in.dtype)
        x_prev = jnp.concatenate([zero, x_in[:, :T - 1, :]], axis=1)
        x_next = jnp.concatenate([x_in[:, 1:, :], zero], axis=1)
        # im2col along the lane axis -> one deep-K MXU matmul.
        lhs = jnp.concatenate([x_prev, x_in, x_next], axis=-1)      # (TB, T, 3Cin)
        lhs = lhs.reshape(TBq * T, 3 * Cin).astype(jnp.bfloat16)
        h = jnp.dot(lhs, w_ref[...], preferred_element_type=jnp.float32)
        h = jnp.maximum(h + b_ref[...], 0.0)                        # f32 epilogue
        return h                                                    # (TB*T, Cout)

    def maxpool2_rows(h):
        # Rows are (batch-major, time-minor) with an even time length, so
        # MaxPool1d(2) == max over adjacent row pairs: one VPU max.
        M, C = h.shape
        hp = h.reshape(M // 2, 2, C)
        return jnp.maximum(hp[:, 0, :], hp[:, 1, :])                # (M//2, C)

    h1 = conv1d_relu(x, w1_ref, b1_ref)                 # (TB*L,   128)
    p1 = maxpool2_rows(h1)                              # (TB*L/2, 128)
    p1 = p1.reshape(TB, L // 2, 128)
    h2 = conv1d_relu(p1, w2_ref, b2_ref)                # (TB*L/2, 256)
    p2 = maxpool2_rows(h2)                              # (TB, 256)  (L//4 == 1)

    # flatten is the identity here: final time length is 1 (required by
    # Linear(256, ...) in the reference model).
    z1 = jnp.dot(p2.astype(jnp.bfloat16), fc1w_ref[...],
                 preferred_element_type=jnp.float32)
    z1 = jnp.maximum(z1 + fc1b_ref[...], 0.0)           # Linear(256,128) + ReLU
    # Dropout(0.5) is identity at inference time (eval mode).
    z2 = jnp.dot(z1.astype(jnp.bfloat16), fc2w_ref[...],
                 preferred_element_type=jnp.float32)
    out_ref[...] = z2 + fc2b_ref[...]                   # (TB, 128) lane-dense


def word2vec_forward(tokens, params, *, num_classes, batch_tile=8):
    # TODO(synk): fuse the embedding gather into the kernel (scalar-prefetch
    # token ids + manual DMA gather from an HBM-resident table) to remove the
    # (B, L, E) HBM round-trip.
    emb = jnp.take(params["embedding"], tokens, axis=0)   # (B, L, E) f32
    B, L, E = emb.shape
    assert L == 4, "Linear(256) after two MaxPool1d(2) requires L == 4"

    # Batch tile: multiple of 8 sublanes (or the whole batch if it is small).
    if B <= batch_tile:
        TB = B
    else:
        assert batch_tile % 8 == 0
        TB = batch_tile
    B_pad = ((B + TB - 1) // TB) * TB
    if B_pad != B:
        emb = jnp.pad(emb, ((0, B_pad - B), (0, 0), (0, 0)))
    nb = B_pad // TB
    cls_pad = params["fc2_w"].shape[1]                    # 128-lane padded

    ins = (emb,
           params["conv1_w"], params["conv1_b"],
           params["conv2_w"], params["conv2_b"],
           params["fc1_w"], params["fc1_b"],
           params["fc2_w"], params["fc2_b"])

    def const_spec(a):
        nd = a.ndim
        return pl.BlockSpec(a.shape, lambda i, nd=nd: (0,) * nd)

    out = pl.pallas_call(
        word2vec_kernel,
        out_shape=jax.ShapeDtypeStruct((B_pad, cls_pad), jnp.float32),
        grid_spec=pltpu.PrefetchScalarGridSpec(
            num_scalar_prefetch=0,
            grid=(nb,),
            in_specs=[pl.BlockSpec((TB, L, E), lambda i: (i, 0, 0))]
                     + [const_spec(a) for a in ins[1:]],
            out_specs=pl.BlockSpec((TB, cls_pad), lambda i: (i, 0)),
        ),
        compiler_params=pltpu.CompilerParams(
            dimension_semantics=("parallel",)),
    )(*ins)
    return out[:B, :num_classes]


def init_params(key, vocab_size, embedding_dim, num_classes, cls_pad=128):
    ks = jax.random.split(key, 9)
    E = embedding_dim

    def u(k, shape, fan_in):
        bound = 1.0 / (fan_in ** 0.5)
        return jax.random.uniform(k, shape, jnp.float32, -bound, bound)

    # Conv weights: torch layout (Cout, Cin, K) -> fused (K*Cin, Cout), tap-major.
    conv1_w = u(ks[1], (3, E, 128), E * 3).reshape(3 * E, 128)
    conv2_w = u(ks[3], (3, 128, 256), 128 * 3).reshape(3 * 128, 256)
    fc2_w = jnp.pad(u(ks[7], (128, num_classes), 128),
                    ((0, 0), (0, cls_pad - num_classes)))
    fc2_b = jnp.pad(u(ks[8], (1, num_classes), 128),
                    ((0, 0), (0, cls_pad - num_classes)))

    return {
        "embedding": jax.random.normal(ks[0], (vocab_size, E), jnp.float32),
        "conv1_w": conv1_w.astype(jnp.bfloat16),
        "conv1_b": u(ks[2], (1, 128), E * 3),
        "conv2_w": conv2_w.astype(jnp.bfloat16),
        "conv2_b": u(ks[4], (1, 256), 128 * 3),
        "fc1_w":   u(ks[5], (256, 128), 256).astype(jnp.bfloat16),
        "fc1_b":   u(ks[6], (1, 128), 256),
        "fc2_w":   fc2_w.astype(jnp.bfloat16),
        "fc2_b":   fc2_b,
    }


if __name__ == "__main__":
    vocab_size, embedding_dim, num_classes = 50, 32, 5
    batch, seq_len = 32, 4   # seq_len=4 so 256 * (L//4) == 256 for the FC

    key = jax.random.PRNGKey(0)
    k_tok, k_par = jax.random.split(key)
    tokens = jax.random.randint(k_tok, (batch, seq_len), 0, vocab_size,
                                dtype=jnp.int32)
    params = init_params(k_par, vocab_size, embedding_dim, num_classes)

    out = word2vec_forward(tokens, params, num_classes=num_classes,
                           batch_tile=8)
    jax.block_until_ready(out)
    assert out.shape == (batch, num_classes)
    print("KERNEL_OK")
</pallas_src>

<mosaic_0001>
module attributes {stable_mosaic.version = 11 : i64} {
  func.func @word2vec_kernel(%arg0: i32, %arg1: memref<8x4x32xf32, #tpu.memory_space<vmem>>, %arg2: memref<96x128xbf16, #tpu.memory_space<vmem>>, %arg3: memref<1x128xf32, #tpu.memory_space<vmem>>, %arg4: memref<384x256xbf16, #tpu.memory_space<vmem>>, %arg5: memref<1x256xf32, #tpu.memory_space<vmem>>, %arg6: memref<256x128xbf16, #tpu.memory_space<vmem>>, %arg7: memref<1x128xf32, #tpu.memory_space<vmem>>, %arg8: memref<128x128xbf16, #tpu.memory_space<vmem>>, %arg9: memref<1x128xf32, #tpu.memory_space<vmem>>, %arg10: memref<8x128xf32, #tpu.memory_space<vmem>>) attributes {dimension_semantics = [#tpu.dimension_semantics<parallel>], iteration_bounds = array<i64: 4>, scalar_prefetch = 0 : i64, scratch_operands = 0 : i64, tpu.core_type = #tpu.core_type<tc>, window_params = [{transform_indices = @transform_0, window_bounds = array<i64: 8, 4, 32>}, {pipeline_mode = #tpu.pipeline_mode<synchronous>, transform_indices = @transform_1, window_bounds = array<i64: 96, 128>}, {pipeline_mode = #tpu.pipeline_mode<synchronous>, transform_indices = @transform_2, window_bounds = array<i64: 1, 128>}, {pipeline_mode = #tpu.pipeline_mode<synchronous>, transform_indices = @transform_3, window_bounds = array<i64: 384, 256>}, {pipeline_mode = #tpu.pipeline_mode<synchronous>, transform_indices = @transform_4, window_bounds = array<i64: 1, 256>}, {pipeline_mode = #tpu.pipeline_mode<synchronous>, transform_indices = @transform_5, window_bounds = array<i64: 256, 128>}, {pipeline_mode = #tpu.pipeline_mode<synchronous>, transform_indices = @transform_6, window_bounds = array<i64: 1, 128>}, {pipeline_mode = #tpu.pipeline_mode<synchronous>, transform_indices = @transform_7, window_bounds = array<i64: 128, 128>}, {pipeline_mode = #tpu.pipeline_mode<synchronous>, transform_indices = @transform_8, window_bounds = array<i64: 1, 128>}, {transform_indices = @transform_9, window_bounds = array<i64: 8, 128>}]} {
    %c0 = arith.constant 0 : index
    %c0_0 = arith.constant 0 : index
    %c0_1 = arith.constant 0 : index
    %0 = vector.load %arg1[%c0, %c0_0, %c0_1] : memref<8x4x32xf32, #tpu.memory_space<vmem>>, vector<8x4x32xf32>
    %cst = arith.constant 0.000000e+00 : f32
    %1 = vector.broadcast %cst : f32 to vector<8x1x32xf32>
    %2 = vector.extract_strided_slice %0 {offsets = [0, 0, 0], sizes = [8, 3, 32], strides = [1, 1, 1]} : vector<8x4x32xf32> to vector<8x3x32xf32>
    %3 = tpu.concatenate %1, %2 in 1 : vector<8x1x32xf32>, vector<8x3x32xf32> -> vector<8x4x32xf32>
    %4 = vector.extract_strided_slice %0 {offsets = [0, 1, 0], sizes = [8, 3, 32], strides = [1, 1, 1]} : vector<8x4x32xf32> to vector<8x3x32xf32>
    %5 = tpu.concatenate %4, %1 in 1 : vector<8x3x32xf32>, vector<8x1x32xf32> -> vector<8x4x32xf32>
    %6 = tpu.concatenate %3, %0, %5 in 2 : vector<8x4x32xf32>, vector<8x4x32xf32>, vector<8x4x32xf32> -> vector<8x4x96xf32>
    %7 = vector.shape_cast %6 : vector<8x4x96xf32> to vector<32x96xf32>
    %8 = arith.truncf %7 : vector<32x96xf32> to vector<32x96xbf16>
    %c0_2 = arith.constant 0 : index
    %c0_3 = arith.constant 0 : index
    %9 = vector.load %arg2[%c0_2, %c0_3] : memref<96x128xbf16, #tpu.memory_space<vmem>>, vector<96x128xbf16>
    %cst_4 = arith.constant dense<0.000000e+00> : vector<32x128xf32>
    %10 = tpu.matmul %8, %9, %cst_4 {dimension_numbers = #tpu.dot_dimension_numbers<[1], [0], [0], [1], [0, 0, 1, 1], [], []>} : vector<32x96xbf16>, vector<96x128xbf16>, vector<32x128xf32> -> vector<32x128xf32>
    %c0_5 = arith.constant 0 : index
    %c0_6 = arith.constant 0 : index
    %11 = vector.load %arg3[%c0_5, %c0_6] : memref<1x128xf32, #tpu.memory_space<vmem>>, vector<1x128xf32>
    %12 = vector.broadcast %11 : vector<1x128xf32> to vector<32x128xf32>
    %13 = arith.addf %10, %12 : vector<32x128xf32>
    %cst_7 = arith.constant 0.000000e+00 : f32
    %14 = vector.broadcast %cst_7 : f32 to vector<32x128xf32>
    %15 = arith.maximumf %13, %14 : vector<32x128xf32>
    %16 = vector.shape_cast %15 : vector<32x128xf32> to vector<16x2x128xf32>
    %17 = vector.extract_strided_slice %16 {offsets = [0, 0, 0], sizes = [16, 1, 128], strides = [1, 1, 1]} : vector<16x2x128xf32> to vector<16x1x128xf32>
    %18 = vector.shape_cast %17 : vector<16x1x128xf32> to vector<16x128xf32>
    %19 = vector.extract_strided_slice %16 {offsets = [0, 1, 0], sizes = [16, 1, 128], strides = [1, 1, 1]} : vector<16x2x128xf32> to vector<16x1x128xf32>
    %20 = vector.shape_cast %19 : vector<16x1x128xf32> to vector<16x128xf32>
    %21 = arith.maximumf %18, %20 : vector<16x128xf32>
    %22 = vector.shape_cast %21 : vector<16x128xf32> to vector<8x2x128xf32>
    %cst_8 = arith.constant 0.000000e+00 : f32
    %23 = vector.broadcast %cst_8 : f32 to vector<8x1x128xf32>
    %24 = vector.extract_strided_slice %22 {offsets = [0, 0, 0], sizes = [8, 1, 128], strides = [1, 1, 1]} : vector<8x2x128xf32> to vector<8x1x128xf32>
    %25 = tpu.concatenate %23, %24 in 1 : vector<8x1x128xf32>, vector<8x1x128xf32> -> vector<8x2x128xf32>
    %26 = vector.extract_strided_slice %22 {offsets = [0, 1, 0], sizes = [8, 1, 128], strides = [1, 1, 1]} : vector<8x2x128xf32> to vector<8x1x128xf32>
    %27 = tpu.concatenate %26, %23 in 1 : vector<8x1x128xf32>, vector<8x1x128xf32> -> vector<8x2x128xf32>
    %28 = tpu.concatenate %25, %22, %27 in 2 : vector<8x2x128xf32>, vector<8x2x128xf32>, vector<8x2x128xf32> -> vector<8x2x384xf32>
    %29 = vector.shape_cast %28 : vector<8x2x384xf32> to vector<16x384xf32>
    %30 = arith.truncf %29 : vector<16x384xf32> to vector<16x384xbf16>
    %c0_9 = arith.constant 0 : index
    %c0_10 = arith.constant 0 : index
    %31 = vector.load %arg4[%c0_9, %c0_10] : memref<384x256xbf16, #tpu.memory_space<vmem>>, vector<384x256xbf16>
    %cst_11 = arith.constant dense<0.000000e+00> : vector<16x256xf32>
    %32 = tpu.matmul %30, %31, %cst_11 {dimension_numbers = #tpu.dot_dimension_numbers<[1], [0], [0], [1], [0, 0, 1, 1], [], []>} : vector<16x384xbf16>, vector<384x256xbf16>, vector<16x256xf32> -> vector<16x256xf32>
    %c0_12 = arith.constant 0 : index
    %c0_13 = arith.constant 0 : index
    %33 = vector.load %arg5[%c0_12, %c0_13] : memref<1x256xf32, #tpu.memory_space<vmem>>, vector<1x256xf32>
    %34 = vector.broadcast %33 : vector<1x256xf32> to vector<16x256xf32>
    %35 = arith.addf %32, %34 : vector<16x256xf32>
    %cst_14 = arith.constant 0.000000e+00 : f32
    %36 = vector.broadcast %cst_14 : f32 to vector<16x256xf32>
    %37 = arith.maximumf %35, %36 : vector<16x256xf32>
    %38 = vector.shape_cast %37 : vector<16x256xf32> to vector<8x2x256xf32>
    %39 = vector.extract_strided_slice %38 {offsets = [0, 0, 0], sizes = [8, 1, 256], strides = [1, 1, 1]} : vector<8x2x256xf32> to vector<8x1x256xf32>
    %40 = vector.shape_cast %39 : vector<8x1x256xf32> to vector<8x256xf32>
    %41 = vector.extract_strided_slice %38 {offsets = [0, 1, 0], sizes = [8, 1, 256], strides = [1, 1, 1]} : vector<8x2x256xf32> to vector<8x1x256xf32>
    %42 = vector.shape_cast %41 : vector<8x1x256xf32> to vector<8x256xf32>
    %43 = arith.maximumf %40, %42 : vector<8x256xf32>
    %44 = arith.truncf %43 : vector<8x256xf32> to vector<8x256xbf16>
    %c0_15 = arith.constant 0 : index
    %c0_16 = arith.constant 0 : index
    %45 = vector.load %arg6[%c0_15, %c0_16] : memref<256x128xbf16, #tpu.memory_space<vmem>>, vector<256x128xbf16>
    %cst_17 = arith.constant dense<0.000000e+00> : vector<8x128xf32>
    %46 = tpu.matmul %44, %45, %cst_17 {dimension_numbers = #tpu.dot_dimension_numbers<[1], [0], [0], [1], [0, 0, 1, 1], [], []>} : vector<8x256xbf16>, vector<256x128xbf16>, vector<8x128xf32> -> vector<8x128xf32>
    %c0_18 = arith.constant 0 : index
    %c0_19 = arith.constant 0 : index
    %47 = vector.load %arg7[%c0_18, %c0_19] : memref<1x128xf32, #tpu.memory_space<vmem>>, vector<1x128xf32>
    %48 = vector.broadcast %47 : vector<1x128xf32> to vector<8x128xf32>
    %49 = arith.addf %46, %48 : vector<8x128xf32>
    %cst_20 = arith.constant 0.000000e+00 : f32
    %50 = vector.broadcast %cst_20 : f32 to vector<8x128xf32>
    %51 = arith.maximumf %49, %50 : vector<8x128xf32>
    %52 = arith.truncf %51 : vector<8x128xf32> to vector<8x128xbf16>
    %c0_21 = arith.constant 0 : index
    %c0_22 = arith.constant 0 : index
    %53 = vector.load %arg8[%c0_21, %c0_22] : memref<128x128xbf16, #tpu.memory_space<vmem>>, vector<128x128xbf16>
    %cst_23 = arith.constant dense<0.000000e+00> : vector<8x128xf32>
    %54 = tpu.matmul %52, %53, %cst_23 {dimension_numbers = #tpu.dot_dimension_numbers<[1], [0], [0], [1], [0, 0, 1, 1], [], []>} : vector<8x128xbf16>, vector<128x128xbf16>, vector<8x128xf32> -> vector<8x128xf32>
    %c0_24 = arith.constant 0 : index
    %c0_25 = arith.constant 0 : index
    %55 = vector.load %arg9[%c0_24, %c0_25] : memref<1x128xf32, #tpu.memory_space<vmem>>, vector<1x128xf32>
    %56 = vector.broadcast %55 : vector<1x128xf32> to vector<8x128xf32>
    %57 = arith.addf %54, %56 : vector<8x128xf32>
    %c0_26 = arith.constant 0 : index
    %c0_27 = arith.constant 0 : index
    %58 = vector.load %arg10[%c0_26, %c0_27] : memref<8x128xf32, #tpu.memory_space<vmem>>, vector<8x128xf32>
    tpu.vector_store %arg10[%c0_26, %c0_27], %57 {strides = array<i32>} : memref<8x128xf32, #tpu.memory_space<vmem>>, vector<8x128xf32>,
    return
  }
  func.func @transform_0(%arg0: i32) -> (i32, i32, i32) {
    %c0_i32 = arith.constant 0 : i32
    %c0_i32_0 = arith.constant 0 : i32
    %c0_i32_1 = arith.constant 0 : i32
    return %arg0, %c0_i32, %c0_i32_0 : i32, i32, i32
  }
  func.func @transform_1(%arg0: i32) -> (i32, i32) {
    %c0_i32 = arith.constant 0 : i32
    %c0_i32_0 = arith.constant 0 : i32
    %c0_i32_1 = arith.constant 0 : i32
    return %c0_i32, %c0_i32_0 : i32, i32
  }
  func.func @transform_2(%arg0: i32) -> (i32, i32) {
    %c0_i32 = arith.constant 0 : i32
    %c0_i32_0 = arith.constant 0 : i32
    %c0_i32_1 = arith.constant 0 : i32
    return %c0_i32, %c0_i32_0 : i32, i32
  }
  func.func @transform_3(%arg0: i32) -> (i32, i32) {
    %c0_i32 = arith.constant 0 : i32
    %c0_i32_0 = arith.constant 0 : i32
    %c0_i32_1 = arith.constant 0 : i32
    return %c0_i32, %c0_i32_0 : i32, i32
  }
  func.func @transform_4(%arg0: i32) -> (i32, i32) {
    %c0_i32 = arith.constant 0 : i32
    %c0_i32_0 = arith.constant 0 : i32
    %c0_i32_1 = arith.constant 0 : i32
    return %c0_i32, %c0_i32_0 : i32, i32
  }
  func.func @transform_5(%arg0: i32) -> (i32, i32) {
    %c0_i32 = arith.constant 0 : i32
    %c0_i32_0 = arith.constant 0 : i32
    %c0_i32_1 = arith.constant 0 : i32
    return %c0_i32, %c0_i32_0 : i32, i32
  }
  func.func @transform_6(%arg0: i32) -> (i32, i32) {
    %c0_i32 = arith.constant 0 : i32
    %c0_i32_0 = arith.constant 0 : i32
    %c0_i32_1 = arith.constant 0 : i32
    return %c0_i32, %c0_i32_0 : i32, i32
  }
  func.func @transform_7(%arg0: i32) -> (i32, i32) {
    %c0_i32 = arith.constant 0 : i32
    %c0_i32_0 = arith.constant 0 : i32
    %c0_i32_1 = arith.constant 0 : i32
    return %c0_i32, %c0_i32_0 : i32, i32
  }
  func.func @transform_8(%arg0: i32) -> (i32, i32) {
    %c0_i32 = arith.constant 0 : i32
    %c0_i32_0 = arith.constant 0 : i32
    %c0_i32_1 = arith.constant 0 : i32
    return %c0_i32, %c0_i32_0 : i32, i32
  }
  func.func @transform_9(%arg0: i32) -> (i32, i32) {
    %c0_i32 = arith.constant 0 : i32
    %c0_i32_0 = arith.constant 0 : i32
    return %arg0, %c0_i32 : i32, i32
  }
}

</mosaic_0001>

<llo_original>
// kernel: tpu_custom_call.1
$region0: #{tpu_custom_call.1}
  #allocation0 [shape = 'u32[]', space=smem, size = 0x4, offset = 0x4, fixed_abs, tag = 'smem constant byte address 0x4 - core index']
  #allocation1 [shape = 'u32[144,128]{1,0:T(1,128)}', space=vmem, size = 0x12000, scoped, tag = 'internal scratch']
  %s0 = inlined_call_operand.hbm [shape: f32[32,4,32], index: 0, kind: input, shape index: {}]
  %s1 = inlined_call_operand.hbm [shape: bf16[96,128], index: 1, kind: input, shape index: {}]
  %s2 = inlined_call_operand.vmem [shape: f32[1,128], index: 2, kind: input, shape index: {}]
  %s3 = inlined_call_operand.hbm [shape: bf16[384,256], index: 3, kind: input, shape index: {}]
  %s4 = inlined_call_operand.vmem [shape: f32[1,256], index: 4, kind: input, shape index: {}]
  %s5 = inlined_call_operand.hbm [shape: bf16[256,128], index: 5, kind: input, shape index: {}]
  %s6 = inlined_call_operand.vmem [shape: f32[1,128], index: 6, kind: input, shape index: {}]
  %s7 = inlined_call_operand.hbm [shape: bf16[128,128], index: 7, kind: input, shape index: {}]
  %s8 = inlined_call_operand.vmem [shape: f32[1,128], index: 8, kind: input, shape index: {}]
  %s9 = inlined_call_operand.hbm [shape: f32[32,128], index: 9, kind: output, shape index: {}]
  %s10 = sld [smem:[#allocation0]]
  $region89: #{tpu_custom_call.1} parent=0
    _
  %s12 = ssub.s32 1, %s10
  %s13 = scalar_select 0, %s12, %s10
  $region1: #{tpu_custom_call.1} parent=0
    #allocation2 [shape = 'u8[32768]{0}', space=vmem, size = 0x8000, scoped, tag = 'input window, operand 0']
    #allocation3 [shape = 's32[2]{0}', space=sflag, size = 0x8, scoped, tag = 'scoped memory for tpu_custom_call.1']
    #allocation4 [shape = 's32[2]{0}', space=sflag, size = 0x8, scoped, tag = 'scoped memory for tpu_custom_call.1']
    #allocation5 [shape = 'u8[24576]{0}', space=vmem, size = 0x6000, scoped, tag = 'input window, operand 1, single buffered']
    #allocation6 [shape = 's32[1]{0}', space=sflag, size = 0x4, scoped, tag = 'scoped memory for tpu_custom_call.1']
    #allocation7 [shape = 'u8[196608]{0}', space=vmem, size = 0x30000, scoped, tag = 'input window, operand 3, single buffered']
    #allocation8 [shape = 'u8[65536]{0}', space=vmem, size = 0x10000, scoped, tag = 'input window, operand 5, single buffered']
    #allocation9 [shape = 's32[1]{0}', space=sflag, size = 0x4, scoped, tag = 'scoped memory for tpu_custom_call.1']
    #allocation10 [shape = 'u8[32768]{0}', space=vmem, size = 0x8000, scoped, tag = 'input window, operand 7, single buffered']
    #allocation11 [shape = 'u8[8192]{0}', space=vmem, size = 0x2000, scoped, tag = 'output window, operand 0']
    %14 = vsyncpa [#allocation3], 0
    %s15 = scalar_lea.sflag [#allocation3], 1
    %16 = vsyncpa %s15, 0
    %17 = vsyncpa [#allocation6], 0
    %18 = vsyncpa [#allocation9], 0
    %19 = vsyncpa [#allocation4], 0
    %s20 = scalar_lea.sflag [#allocation4], 1
    %21 = vsyncpa %s20, 0
    loop: start=0, step=1, limit=6
    $region2: #{tpu_custom_call.1} parent=1 // loop_pre_header
      _
    $region3: #{tpu_custom_call.1} parent=1 // loop_header
      %s23 = sphi 0, %s27
      %p24 = scmp.ge.s32.totalorder %s23, 6
      %s33 = sphi 0, %s35
      %s36 = sphi 0, %s33
      %s37 = sphi 0, %s36
      %s53 = sphi 0, %s37
      %s57 = sphi 0, %s57
      %s59 = sphi 0, %s57
      %s60 = sphi 0, %s59
      %s74 = sphi 0, %s60
      %s78 = sphi 0, %s78
      %s80 = sphi 0, %s78
      %s81 = sphi 0, %s80
      %s95 = sphi 0, %s81
      %s99 = sphi 0, %s99
      %s101 = sphi 0, %s99
      %s102 = sphi 0, %s101
      %s116 = sphi 0, %s102
      %s120 = sphi 0, %s120
      %s122 = sphi 0, %s120
      %s123 = sphi 0, %s122
      %s137 = sphi 0, %s123
      %s141 = sphi 0, %s141
      %s143 = sphi 0, %s141
      %s144 = sphi 0, %s143
      %s158 = sphi 0, %s144
      %s162 = sphi 0, %s162
      %s164 = sphi 0, %s162
      %s165 = sphi 0, %s164
      %s179 = sphi 0, %s165
      %s183 = sphi 0, %s183
      %s185 = sphi 0, %s183
      %s186 = sphi 0, %s185
      %s200 = sphi 0, %s186
      %s204 = sphi 0, %s204
      %s206 = sphi 0, %s204
      %s207 = sphi 0, %s206
      %s221 = sphi 0, %s207
      %s227 = sphi 0, %s229
      %s230 = sphi 0, %s227
      %s231 = sphi 0, %s230
      %s247 = sphi 0, %s231
    $region4: #{tpu_custom_call.1} parent=1 // loop_header_branch
      %26 = sbr.rel (%p24) target = $region8
    $region5: #{tpu_custom_call.1} parent=1 // loop_body
      %s28 = ssub.s32 %s23, 1
      %s29 = ssub.s32 %s23, 2
      %s30 = sadd.s32 %s23, 1
      %s31 = ssub.s32 %s23, %s30
      %p32 = scmp.eq.s32.totalorder %s31, 0
      %s34 = sadd.s32 %s33, 1
      %s35 = scalar_select %p32, %s33, %s34
      %p38 = pneg %p32
      %p39 = scmp.eq.s32.totalorder %s23, 3
      %p40 = por %p38, %p39
      %p41 = scmp.ne.s32.totalorder %s33, %s36
      %p42 = scmp.eq.s32.totalorder %s23, 0
      %p43 = por %p41, %p42
      %p44 = scmp.ne.s32.totalorder %s33, %s36
      %p45 = scmp.eq.s32.totalorder %s28, 3
      %p46 = por %p44, %p45
      %p47 = scmp.ne.s32.totalorder %s36, %s37
      %p48 = scmp.eq.s32.totalorder %s28, 0
      %p49 = por %p47, %p48
      %p50 = scmp.ne.s32.totalorder %s36, %s37
      %p51 = scmp.eq.s32.totalorder %s29, 3
      %p52 = por %p50, %p51
      %p54 = scmp.ne.s32.totalorder %s37, %s53
      %p55 = scmp.eq.s32.totalorder %s29, 0
      %p56 = por %p54, %p55
      %s58 = sadd.s32 %s57, 1
      %p61 = scmp.eq.s32.totalorder %s23, 3
      %p62 = scmp.ne.s32.totalorder %s57, %s59
      %p63 = scmp.eq.s32.totalorder %s23, 0
      %p64 = por %p62, %p63
      %p65 = scmp.ne.s32.totalorder %s57, %s59
      %p66 = scmp.eq.s32.totalorder %s28, 3
      %p67 = por %p65, %p66
      %p68 = scmp.ne.s32.totalorder %s59, %s60
      %p69 = scmp.eq.s32.totalorder %s28, 0
      %p70 = por %p68, %p69
      %p71 = scmp.ne.s32.totalorder %s59, %s60
      %p72 = scmp.eq.s32.totalorder %s29, 3
      %p73 = por %p71, %p72
      %p75 = scmp.ne.s32.totalorder %s60, %s74
      %p76 = scmp.eq.s32.totalorder %s29, 0
      %p77 = por %p75, %p76
      %s79 = sadd.s32 %s78, 1
      %p82 = scmp.eq.s32.totalorder %s23, 3
      %p83 = scmp.ne.s32.totalorder %s78, %s80
      %p84 = scmp.eq.s32.totalorder %s23, 0
      %p85 = por %p83, %p84
      %p86 = scmp.ne.s32.totalorder %s78, %s80
      %p87 = scmp.eq.s32.totalorder %s28, 3
      %p88 = por %p86, %p87
      %p89 = scmp.ne.s32.totalorder %s80, %s81
      %p90 = scmp.eq.s32.totalorder %s28, 0
      %p91 = por %p89, %p90
      %p92 = scmp.ne.s32.totalorder %s80, %s81
      %p93 = scmp.eq.s32.totalorder %s29, 3
      %p94 = por %p92, %p93
      %p96 = scmp.ne.s32.totalorder %s81, %s95
      %p97 = scmp.eq.s32.totalorder %s29, 0
      %p98 = por %p96, %p97
      %s100 = sadd.s32 %s99, 1
      %p103 = scmp.eq.s32.totalorder %s23, 3
      %p104 = scmp.ne.s32.totalorder %s99, %s101
      %p105 = scmp.eq.s32.totalorder %s23, 0
      %p106 = por %p104, %p105
      %p107 = scmp.ne.s32.totalorder %s99, %s101
      %p108 = scmp.eq.s32.totalorder %s28, 3
      %p109 = por %p107, %p108
      %p110 = scmp.ne.s32.totalorder %s101, %s102
      %p111 = scmp.eq.s32.totalorder %s28, 0
      %p112 = por %p110, %p111
      %p113 = scmp.ne.s32.totalorder %s101, %s102
      %p114 = scmp.eq.s32.totalorder %s29, 3
      %p115 = por %p113, %p114
      %p117 = scmp.ne.s32.totalorder %s102, %s116
      %p118 = scmp.eq.s32.totalorder %s29, 0
      %p119 = por %p117, %p118
      %s121 = sadd.s32 %s120, 1
      %p124 = scmp.eq.s32.totalorder %s23, 3
      %p125 = scmp.ne.s32.totalorder %s120, %s122
      %p126 = scmp.eq.s32.totalorder %s23, 0
      %p127 = por %p125, %p126
      %p128 = scmp.ne.s32.totalorder %s120, %s122
      %p129 = scmp.eq.s32.totalorder %s28, 3
      %p130 = por %p128, %p129
      %p131 = scmp.ne.s32.totalorder %s122, %s123
      %p132 = scmp.eq.s32.totalorder %s28, 0
      %p133 = por %p131, %p132
      %p134 = scmp.ne.s32.totalorder %s122, %s123
      %p135 = scmp.eq.s32.totalorder %s29, 3
      %p136 = por %p134, %p135
      %p138 = scmp.ne.s32.totalorder %s123, %s137
      %p139 = scmp.eq.s32.totalorder %s29, 0
      %p140 = por %p138, %p139
      %s142 = sadd.s32 %s141, 1
      %p145 = scmp.eq.s32.totalorder %s23, 3
      %p146 = scmp.ne.s32.totalorder %s141, %s143
      %p147 = scmp.eq.s32.totalorder %s23, 0
      %p148 = por %p146, %p147
      %p149 = scmp.ne.s32.totalorder %s141, %s143
      %p150 = scmp.eq.s32.totalorder %s28, 3
      %p151 = por %p149, %p150
      %p152 = scmp.ne.s32.totalorder %s143, %s144
      %p153 = scmp.eq.s32.totalorder %s28, 0
      %p154 = por %p152, %p153
      %p155 = scmp.ne.s32.totalorder %s143, %s144
      %p156 = scmp.eq.s32.totalorder %s29, 3
      %p157 = por %p155, %p156
      %p159 = scmp.ne.s32.totalorder %s144, %s158
      %p160 = scmp.eq.s32.totalorder %s29, 0
      %p161 = por %p159, %p160
      %s163 = sadd.s32 %s162, 1
      %p166 = scmp.eq.s32.totalorder %s23, 3
      %p167 = scmp.ne.s32.totalorder %s162, %s164
      %p168 = scmp.eq.s32.totalorder %s23, 0
      %p169 = por %p167, %p168
      %p170 = scmp.ne.s32.totalorder %s162, %s164
      %p171 = scmp.eq.s32.totalorder %s28, 3
      %p172 = por %p170, %p171
      %p173 = scmp.ne.s32.totalorder %s164, %s165
      %p174 = scmp.eq.s32.totalorder %s28, 0
      %p175 = por %p173, %p174
      %p176 = scmp.ne.s32.totalorder %s164, %s165
      %p177 = scmp.eq.s32.totalorder %s29, 3
      %p178 = por %p176, %p177
      %p180 = scmp.ne.s32.totalorder %s165, %s179
      %p181 = scmp.eq.s32.totalorder %s29, 0
      %p182 = por %p180, %p181
      %s184 = sadd.s32 %s183, 1
      %p187 = scmp.eq.s32.totalorder %s23, 3
      %p188 = scmp.ne.s32.totalorder %s183, %s185
      %p189 = scmp.eq.s32.totalorder %s23, 0
      %p190 = por %p188, %p189
      %p191 = scmp.ne.s32.totalorder %s183, %s185
      %p192 = scmp.eq.s32.totalorder %s28, 3
      %p193 = por %p191, %p192
      %p194 = scmp.ne.s32.totalorder %s185, %s186
      %p195 = scmp.eq.s32.totalorder %s28, 0
      %p196 = por %p194, %p195
      %p197 = scmp.ne.s32.totalorder %s185, %s186
      %p198 = scmp.eq.s32.totalorder %s29, 3
      %p199 = por %p197, %p198
      %p201 = scmp.ne.s32.totalorder %s186, %s200
      %p202 = scmp.eq.s32.totalorder %s29, 0
      %p203 = por %p201, %p202
      %s205 = sadd.s32 %s204, 1
      %p208 = scmp.eq.s32.totalorder %s23, 3
      %p209 = scmp.ne.s32.totalorder %s204, %s206
      %p210 = scmp.eq.s32.totalorder %s23, 0
      %p211 = por %p209, %p210
      %p212 = scmp.ne.s32.totalorder %s204, %s206
      %p213 = scmp.eq.s32.totalorder %s28, 3
      %p214 = por %p212, %p213
      %p215 = scmp.ne.s32.totalorder %s206, %s207
      %p216 = scmp.eq.s32.totalorder %s28, 0
      %p217 = por %p215, %p216
      %p218 = scmp.ne.s32.totalorder %s206, %s207
      %p219 = scmp.eq.s32.totalorder %s29, 3
      %p220 = por %p218, %p219
      %p222 = scmp.ne.s32.totalorder %s207, %s221
      %p223 = scmp.eq.s32.totalorder %s29, 0
      %p224 = por %p222, %p223
      %s225 = ssub.s32 %s23, %s30
      %p226 = scmp.eq.s32.totalorder %s225, 0
      %s228 = sadd.s32 %s227, 1
      %s229 = scalar_select %p226, %s227, %s228
      %p232 = pneg %p226
      %p233 = scmp.eq.s32.totalorder %s23, 3
      %p234 = por %p232, %p233
      %p235 = scmp.ne.s32.totalorder %s227, %s230
      %p236 = scmp.eq.s32.totalorder %s23, 0
      %p237 = por %p235, %p236
      %p238 = scmp.ne.s32.totalorder %s227, %s230
      %p239 = scmp.eq.s32.totalorder %s28, 3
      %p240 = por %p238, %p239
      %p241 = scmp.ne.s32.totalorder %s230, %s231
      %p242 = scmp.eq.s32.totalorder %s28, 0
      %p243 = por %p241, %p242
      %p244 = scmp.ne.s32.totalorder %s230, %s231
      %p245 = scmp.eq.s32.totalorder %s29, 3
      %p246 = por %p244, %p245
      %p248 = scmp.ne.s32.totalorder %s231, %s247
      %p249 = scmp.eq.s32.totalorder %s29, 0
      %p250 = por %p248, %p249
      %p251 = scmp.le.s32.totalorder 1, %s23
      %p252 = scmp.lt.s32.totalorder %s23, 5
      %p253 = pnand %p251, %p252
      %p254 = pneg %p253
      // Predicated region
      $region9: #{tpu_custom_call.1} parent=5 // pred_check
        _
      $region10: #{tpu_custom_call.1} parent=5 // pred_check_branch
        %256 = sbr.rel (%p253) target = $region12
      $region11: #{tpu_custom_call.1} parent=5 // pred_region
        %s257 = ssub.s32 %s23, 1
        // Predicated region
        $region13: #{tpu_custom_call.1} parent=11 // pred_check
          %p258 = pneg %p70
        $region14: #{tpu_custom_call.1} parent=11 // pred_check_branch
          %260 = sbr.rel (%p258) target = $region16
        $region15: #{tpu_custom_call.1} parent=11 // pred_region
          %s262 = ssub.s32 768, 768
          %263 = vsyncadd [#allocation6], %s262
          %s264 = sshll.u32 [#allocation5], 4
          %s265 = int_to_ptr.vmem [resolvable:$true] %s264
          %270 = dma.hbm_to_vmem [thread:$0]  %s1, 768, %s265, [#allocation6], 64, 64, 4
        $region16: #{tpu_custom_call.1} parent=11 // pred_fallthru
          _
        // Predicated region
        $region17: #{tpu_custom_call.1} parent=11 // pred_check
          %p271 = pneg %p91
        $region18: #{tpu_custom_call.1} parent=11 // pred_check_branch
          %273 = sbr.rel (%p271) target = $region20
        $region19: #{tpu_custom_call.1} parent=11 // pred_region
          _
        $region20: #{tpu_custom_call.1} parent=11 // pred_fallthru
          _
        // Predicated region
        $region21: #{tpu_custom_call.1} parent=11 // pred_check
          %p274 = pneg %p112
        $region22: #{tpu_custom_call.1} parent=11 // pred_check_branch
          %276 = sbr.rel (%p274) target = $region24
        $region23: #{tpu_custom_call.1} parent=11 // pred_region
          %s278 = ssub.s32 6144, 6144
          %279 = vsyncadd [#allocation6], %s278
          %s280 = sshll.u32 [#allocation7], 4
          %s281 = int_to_ptr.vmem [resolvable:$true] %s280
          %286 = dma.hbm_to_vmem [thread:$0]  %s3, 6144, %s281, [#allocation6], 128, 128, 8
        $region24: #{tpu_custom_call.1} parent=11 // pred_fallthru
          _
        // Predicated region
        $region25: #{tpu_custom_call.1} parent=11 // pred_check
          %p287 = pneg %p133
        $region26: #{tpu_custom_call.1} parent=11 // pred_check_branch
          %289 = sbr.rel (%p287) target = $region28
        $region27: #{tpu_custom_call.1} parent=11 // pred_region
          _
        $region28: #{tpu_custom_call.1} parent=11 // pred_fallthru
          _
        // Predicated region
        $region29: #{tpu_custom_call.1} parent=11 // pred_check
          %p290 = pneg %p154
        $region30: #{tpu_custom_call.1} parent=11 // pred_check_branch
          %292 = sbr.rel (%p290) target = $region32
        $region31: #{tpu_custom_call.1} parent=11 // pred_region
          %s294 = ssub.s32 2048, 2048
          %295 = vsyncadd [#allocation9], %s294
          %s296 = sshll.u32 [#allocation8], 4
          %s297 = int_to_ptr.vmem [resolvable:$true] %s296
          %302 = dma.hbm_to_vmem [thread:$0]  %s5, 2048, %s297, [#allocation9], 64, 64, 4
        $region32: #{tpu_custom_call.1} parent=11 // pred_fallthru
          _
        // Predicated region
        $region33: #{tpu_custom_call.1} parent=11 // pred_check
          %p303 = pneg %p175
        $region34: #{tpu_custom_call.1} parent=11 // pred_check_branch
          %305 = sbr.rel (%p303) target = $region36
        $region35: #{tpu_custom_call.1} parent=11 // pred_region
          _
        $region36: #{tpu_custom_call.1} parent=11 // pred_fallthru
          _
        // Predicated region
        $region37: #{tpu_custom_call.1} parent=11 // pred_check
          %p306 = pneg %p196
        $region38: #{tpu_custom_call.1} parent=11 // pred_check_branch
          %308 = sbr.rel (%p306) target = $region40
        $region39: #{tpu_custom_call.1} parent=11 // pred_region
          %s310 = ssub.s32 1024, 1024
          %311 = vsyncadd [#allocation9], %s310
          %s312 = sshll.u32 [#allocation10], 4
          %s313 = int_to_ptr.vmem [resolvable:$true] %s312
          %318 = dma.hbm_to_vmem [thread:$0]  %s7, 1024, %s313, [#allocation9], 64, 64, 4
        $region40: #{tpu_custom_call.1} parent=11 // pred_fallthru
          _
        // Predicated region
        $region41: #{tpu_custom_call.1} parent=11 // pred_check
          %p319 = pneg %p217
        $region42: #{tpu_custom_call.1} parent=11 // pred_check_branch
          %321 = sbr.rel (%p319) target = $region44
        $region43: #{tpu_custom_call.1} parent=11 // pred_region
          _
        $region44: #{tpu_custom_call.1} parent=11 // pred_fallthru
          _
      $region12: #{tpu_custom_call.1} parent=5 // pred_fallthru
        _
      %p322 = scmp.lt.s32.totalorder %s23, 4
      // Predicated region
      $region45: #{tpu_custom_call.1} parent=5 // pred_check
        %p323 = pneg %p322
      $region46: #{tpu_custom_call.1} parent=5 // pred_check_branch
        %325 = sbr.rel (%p323) target = $region48
      $region47: #{tpu_custom_call.1} parent=5 // pred_region
        // Predicated region
        $region49: #{tpu_custom_call.1} parent=47 // pred_check
          %p326 = pneg %p43
        $region50: #{tpu_custom_call.1} parent=47 // pred_check_branch
          %328 = sbr.rel (%p326) target = $region52
        $region51: #{tpu_custom_call.1} parent=47 // pred_region
          %s329 = sand.u32 %s33, 1
          %s330 = scalar_lea.sflag [#allocation3], %s329
          %s331 = sand.u32 %s33, 1
          %s332 = smul.addr %s331, 32
          %s333 = scalar_lea.vmem [#allocation2], %s332
          %s334 = smul.u32 8, %s23
          %s336 = ssub.s32 512, 512
          %337 = vsyncadd %s330, %s336
          %s338 = smul.addr %s334, 64
          %s339 = scalar_lea.hbm %s0, %s338
          %s340 = sshll.u32 %s333, 4
          %s341 = int_to_ptr.vmem [resolvable:$true] %s340
          %346 = dma.hbm_to_vmem [thread:$0]  %s339, 512, %s341, %s330, 64, 64, 4
        $region52: #{tpu_custom_call.1} parent=47 // pred_fallthru
          _
      $region48: #{tpu_custom_call.1} parent=5 // pred_fallthru
        _
      %p347 = scmp.le.s32.totalorder 1, %s23
      %p348 = scmp.lt.s32.totalorder %s23, 5
      %p349 = pnand %p347, %p348
      %p350 = pneg %p349
      // Predicated region
      $region53: #{tpu_custom_call.1} parent=5 // pred_check
        _
      $region54: #{tpu_custom_call.1} parent=5 // pred_check_branch
        %352 = sbr.rel (%p349) target = $region56
      $region55: #{tpu_custom_call.1} parent=5 // pred_region
        %s353 = ssub.s32 %s23, 1
        %s354 = sand.u32 %s36, 1
        %s355 = scalar_lea.sflag [#allocation3], %s354
        %s356 = sand.u32 %s36, 1
        %s357 = smul.addr %s356, 32
        %s358 = scalar_lea.vmem [#allocation2], %s357
        // Predicated region
        $region57: #{tpu_custom_call.1} parent=55 // pred_check
          %p359 = pneg %p49
        $region58: #{tpu_custom_call.1} parent=55 // pred_check_branch
          %361 = sbr.rel (%p359) target = $region60
        $region59: #{tpu_custom_call.1} parent=55 // pred_region
          %362 = dma.done %s355, 512
        $region60: #{tpu_custom_call.1} parent=55 // pred_fallthru
          _
        // Predicated region
        $region61: #{tpu_custom_call.1} parent=55 // pred_check
          %p363 = pneg %p70
        $region62: #{tpu_custom_call.1} parent=55 // pred_check_branch
          %365 = sbr.rel (%p363) target = $region64
        $region63: #{tpu_custom_call.1} parent=55 // pred_region
          %366 = dma.done [#allocation6], 768
        $region64: #{tpu_custom_call.1} parent=55 // pred_fallthru
          _
        // Predicated region
        $region65: #{tpu_custom_call.1} parent=55 // pred_check
          %p367 = pneg %p112
        $region66: #{tpu_custom_call.1} parent=55 // pred_check_branch
          %369 = sbr.rel (%p367) target = $region68
        $region67: #{tpu_custom_call.1} parent=55 // pred_region
          %370 = dma.done [#allocation6], 6144
        $region68: #{tpu_custom_call.1} parent=55 // pred_fallthru
          _
        // Predicated region
        $region69: #{tpu_custom_call.1} parent=55 // pred_check
          %p371 = pneg %p154
        $region70: #{tpu_custom_call.1} parent=55 // pred_check_branch
          %373 = sbr.rel (%p371) target = $region72
        $region71: #{tpu_custom_call.1} parent=55 // pred_region
          %374 = dma.done [#allocation9], 2048
        $region72: #{tpu_custom_call.1} parent=55 // pred_fallthru
          _
        // Predicated region
        $region73: #{tpu_custom_call.1} parent=55 // pred_check
          %p375 = pneg %p196
        $region74: #{tpu_custom_call.1} parent=55 // pred_check_branch
          %377 = sbr.rel (%p375) target = $region76
        $region75: #{tpu_custom_call.1} parent=55 // pred_region
          %378 = dma.done [#allocation9], 1024
        $region76: #{tpu_custom_call.1} parent=55 // pred_fallthru
          _
        %s379 = sand.u32 %s36, 1
        %s380 = scalar_lea.sflag [#allocation3], %s379
        %s381 = sand.u32 %s36, 1
        %s382 = smul.addr %s381, 32
        %s383 = scalar_lea.vmem [#allocation2], %s382
        %p384 = pneg %p49
        %p385 = pneg %p46
        %p386 = pneg %p70
        %p387 = pneg %p67
        %p388 = pneg %p91
        %p389 = pneg %p88
        %p390 = pneg %p112
        %p391 = pneg %p109
        %p392 = pneg %p133
        %p393 = pneg %p130
        %p394 = pneg %p154
        %p395 = pneg %p151
        %p396 = pneg %p175
        %p397 = pneg %p172
        %p398 = pneg %p196
        %p399 = pneg %p193
        %p400 = pneg %p217
        %p401 = pneg %p214
        %p402 = pneg %p243
        %p403 = pneg %p240
        %s404 = sand.u32 %s230, 1
        %s405 = scalar_lea.sflag [#allocation4], %s404
        %s406 = sand.u32 %s230, 1
        %s407 = smul.addr %s406, 8
        %s408 = scalar_lea.vmem [#allocation11], %s407
        %s409 = smul.u32 8, %s28
        %v411 = vld [vmem:[%s358] sm:$0xf]
        %v412 = vld [vmem:[%s358 + $0x4] sm:$0xf]
        %v413 = vld [vmem:[%s358 + $0x8] sm:$0xf]
        %v414 = vld [vmem:[%s358 + $0xc] sm:$0xf]
        %v415 = vld [vmem:[%s358 + $0x10] sm:$0xf]
        %v416 = vld [vmem:[%s358 + $0x14] sm:$0xf]
        %v417 = vld [vmem:[%s358 + $0x18] sm:$0xf]
        %v418 = vld [vmem:[%s358 + $0x1c] sm:$0xf]
        %v427 = vrot.slane %v411, 7
        %v428 = vrot.slane %v412, 7
        %v429 = vrot.slane %v413, 7
        %v430 = vrot.slane %v414, 7
        %v431 = vrot.slane %v415, 7
        %v432 = vrot.slane %v416, 7
        %v433 = vrot.slane %v417, 7
        %v434 = vrot.slane %v418, 7
        %vm443 = vcmask 1040384
        %v444 = vsel %vm443, 0.0, %v427
        %v445 = vsel %vm443, 0.0, %v428
        %v446 = vsel %vm443, 0.0, %v429
        %v447 = vsel %vm443, 0.0, %v430
        %v448 = vsel %vm443, 0.0, %v431
        %v449 = vsel %vm443, 0.0, %v432
        %v450 = vsel %vm443, 0.0, %v433
        %v451 = vsel %vm443, 0.0, %v434
        %v452 = vrot.slane %v411, 1
        %v453 = vrot.slane %v412, 1
        %v454 = vrot.slane %v413, 1
        %v455 = vrot.slane %v414, 1
        %v456 = vrot.slane %v415, 1
        %v457 = vrot.slane %v416, 1
        %v458 = vrot.slane %v417, 1
        %v459 = vrot.slane %v418, 1
        %vm468 = vcmask 1042432
        %v469 = vsel %vm468, %v452, 0.0
        %v470 = vsel %vm468, %v453, 0.0
        %v471 = vsel %vm468, %v454, 0.0
        %v472 = vsel %vm468, %v455, 0.0
        %v473 = vsel %vm468, %v456, 0.0
        %v474 = vsel %vm468, %v457, 0.0
        %v475 = vsel %vm468, %v458, 0.0
        %v476 = vsel %vm468, %v459, 0.0
        %477 = vrot.lane.b32.xlu0 %v411, 32
        %v478 = vpop.permute.xlu0 %477
        %479 = vrot.lane.b32.xlu0 %v412, 32
        %v480 = vpop.permute.xlu0 %479
        %481 = vrot.lane.b32.xlu0 %v413, 32
        %v482 = vpop.permute.xlu0 %481
        %483 = vrot.lane.b32.xlu0 %v414, 32
        %v484 = vpop.permute.xlu0 %483
        %485 = vrot.lane.b32.xlu0 %v415, 32
        %v486 = vpop.permute.xlu0 %485
        %487 = vrot.lane.b32.xlu0 %v416, 32
        %v488 = vpop.permute.xlu0 %487
        %489 = vrot.lane.b32.xlu0 %v417, 32
        %v490 = vpop.permute.xlu0 %489
        %491 = vrot.lane.b32.xlu0 %v418, 32
        %v492 = vpop.permute.xlu0 %491
        %509 = vrot.lane.b32.xlu0 %v469, 64
        %v510 = vpop.permute.xlu0 %509
        %511 = vrot.lane.b32.xlu0 %v470, 64
        %v512 = vpop.permute.xlu0 %511
        %513 = vrot.lane.b32.xlu0 %v471, 64
        %v514 = vpop.permute.xlu0 %513
        %515 = vrot.lane.b32.xlu0 %v472, 64
        %v516 = vpop.permute.xlu0 %515
        %517 = vrot.lane.b32.xlu0 %v473, 64
        %v518 = vpop.permute.xlu0 %517
        %519 = vrot.lane.b32.xlu0 %v474, 64
        %v520 = vpop.permute.xlu0 %519
        %521 = vrot.lane.b32.xlu0 %v475, 64
        %v522 = vpop.permute.xlu0 %521
        %523 = vrot.lane.b32.xlu0 %v476, 64
        %v524 = vpop.permute.xlu0 %523
        %vm533 = vcmask 261120
        %v534 = vsel %vm533, %v444, %v478
        %v535 = vsel %vm533, %v445, %v480
        %v536 = vsel %vm533, %v446, %v482
        %v537 = vsel %vm533, %v447, %v484
        %v538 = vsel %vm533, %v448, %v486
        %v539 = vsel %vm533, %v449, %v488
        %v540 = vsel %vm533, %v450, %v490
        %v541 = vsel %vm533, %v451, %v492
        %vm542 = vcmask 523264
        %v543 = vsel %vm542, %v534, %v510
        %v544 = vsel %vm542, %v535, %v512
        %v545 = vsel %vm542, %v536, %v514
        %v546 = vsel %vm542, %v537, %v516
        %v547 = vsel %vm542, %v538, %v518
        %v548 = vsel %vm542, %v539, %v520
        %v549 = vsel %vm542, %v540, %v522
        %v550 = vsel %vm542, %v541, %v524
        %v559 = vcombine.low %v543, %v544
        %v560 = vcombine.low %v545, %v546
        %v561 = vcombine.low %v547, %v548
        %v562 = vcombine.low %v549, %v550
        %v567 = vpack.c.bf16 %v560, %v559
        %v568 = vpack.c.bf16 %v562, %v561
        %v569 = vld [vmem:[#allocation5] sm:$0xf]
        %v570 = vld [vmem:[#allocation5 + $0x4] sm:$0xf]
        %v571 = vld [vmem:[#allocation5 + $0x8] sm:$0xf]
        %v572 = vld [vmem:[#allocation5 + $0xc] sm:$0xf]
        %v573 = vld [vmem:[#allocation5 + $0x10] sm:$0xf]
        %v574 = vld [vmem:[#allocation5 + $0x14] sm:$0xf]
        %v575 = vld [vmem:[#allocation5 + $0x18] sm:$0xf]
        %v576 = vld [vmem:[#allocation5 + $0x1c] sm:$0xf]
        %v577 = vld [vmem:[#allocation5 + $0x20] sm:$0xf]
        %v578 = vld [vmem:[#allocation5 + $0x24] sm:$0xf]
        %v579 = vld [vmem:[#allocation5 + $0x28] sm:$0xf]
        %v580 = vld [vmem:[#allocation5 + $0x2c] sm:$0xf]
        %v581 = vld [vmem:[%s2] sm:$0x1]
        %v583 = vlaneseq
        %v584 = vshrl.u32 %v583, 7
        %v585 = vsub.s32 0, %v584
        %v586 = vrot.slane %v581, %v585
        %v600 = vunpack.c.l.b16 %v569
        %v601 = vunpack.c.l.b16 %v570
        %v602 = vunpack.c.l.b16 %v571
        %v603 = vunpack.c.l.b16 %v572
        %v604 = vunpack.c.l.b16 %v573
        %v605 = vunpack.c.l.b16 %v574
        %v606 = vunpack.c.l.b16 %v575
        %v607 = vunpack.c.l.b16 %v576
        %v608 = vunpack.c.l.b16 %v577
        %v609 = vunpack.c.l.b16 %v578
        %v610 = vunpack.c.l.b16 %v579
        %v611 = vunpack.c.l.b16 %v580
        %v612 = vpack.c.b16 %v601, %v600
        %v613 = vpack.c.b16 %v603, %v602
        %v614 = vpack.c.b16 %v605, %v604
        %v615 = vpack.c.b16 %v607, %v606
        %v616 = vpack.c.b16 %v609, %v608
        %v617 = vpack.c.b16 %v611, %v610
        %vm624 = vcmask 785408
        %v626 = vsel %vm624, %v567, 0
        %v629 = vsel %vm624, %v568, 0
        %631 = vmatprep.subr.bf16.mxu0 0
        %632 = vmatpush1.bf16.msra.mxu0 0
        %633 = vmatprep.subr.bf16.mxu0 0
        %634 = vmatpush1.bf16.msra.mxu0 0
        %635 = vmatprep.subr.bf16.mxu0 0
        %636 = vmatpush1.bf16.msra.mxu0 %v617
        %637 = vmatprep.subr.bf16.mxu0 0
        %638 = vmatpush1.bf16.msra.mxu0 %v616
        %639 = vmatprep.subr.bf16.mxu0 0
        %640 = vmatpush1.bf16.msra.mxu0 %v615
        %641 = vmatprep.subr.bf16.mxu0 0
        %642 = vmatpush1.bf16.msra.mxu0 %v614
        %643 = vmatprep.subr.bf16.mxu0 0
        %644 = vmatpush1.bf16.msra.mxu0 %v613
        %645 = vmatprep.subr.bf16.mxu0 0
        %646 = vmatpush1.bf16.msra.mxu0 %v612
        %647 = vmatprep.subr.bf16.mxu0 0
        %648 = vmatpush2.bf16.msra.mxu0 0
        %649 = vmatprep.subr.bf16.mxu0 0
        %650 = vmatpush2.bf16.msra.mxu0 0
        %651 = vmatprep.subr.bf16.mxu0 0
        %652 = vmatpush2.bf16.msra.mxu0 0
        %653 = vmatprep.subr.bf16.mxu0 0
        %654 = vmatpush2.bf16.msra.mxu0 0
        %655 = vmatprep.subr.bf16.mxu0 0
        %656 = vmatpush2.bf16.msra.mxu0 0
        %657 = vmatprep.subr.bf16.mxu0 0
        %658 = vmatpush2.bf16.msra.mxu0 0
        %659 = vmatprep.subr.bf16.mxu0 0
        %660 = vmatpush2.bf16.msra.mxu0 0
        %661 = vmatprep.subr.bf16.mxu0 0
        %662 = vmatpush2.bf16.msra.mxu0 0
        %663 = vmatprep.mubr.bf16.mxu0 0
        %664 = vmatmul.mubr.bf16.gmra.mxu0 %v626
        %v665 = vpop.f32.mrf.mxu0
        %v666 = vadd.f32 %v586, %v665
        %v667 = vpop.f32.mrf.mxu0
        %v668 = vpop.f32.mrf.mxu0
        %v669 = vadd.f32 %v586, %v668
        %v670 = vpop.f32.mrf.mxu0
        %671 = vmatprep.mubr.bf16.mxu0 0
        %672 = vmatmul.mubr.bf16.gmra.mxu0 %v629
        %v673 = vpop.f32.mrf.mxu0
        %v674 = vadd.f32 %v586, %v673
        %v675 = vpop.f32.mrf.mxu0
        %v676 = vpop.f32.mrf.mxu0
        %v677 = vadd.f32 %v586, %v676
        %v678 = vpop.f32.mrf.mxu0
        %679 = vdwg.mxu0
        %v680 = vmax.f32 %v666, 0.0
        %v681 = vmax.f32 %v669, 0.0
        %v682 = vmax.f32 %v674, 0.0
        %v683 = vmax.f32 %v677, 0.0
        %v688 = vcombine.high %v680, %v680
        %v690 = vunpack.c.l.s4 1983009808
        %v691 = vunpack.c.0.s8 %v690
        %v692 = vlaneseq
        %v693 = vshrl.u32 %v692, 7
        %v694 = vsub.s32 %v691, %v693
        %v695 = vrot.slane %v680, %v694
        %v697 = vunpack.c.l.s4 1983009808
        %v698 = vunpack.c.0.s8 %v697
        %v699 = vlaneseq
        %v700 = vshrl.u32 %v699, 7
        %v701 = vsub.s32 %v698, %v700
        %v702 = vrot.slane %v688, %v701
        %v703 = vcombine.high %v695, %v695
        %v704 = vcombine.high %v702, %v702
        %v705 = vcombine.high %v681, %v681
        %v707 = vunpack.c.l.s4 1983009808
        %v708 = vunpack.c.0.s8 %v707
        %v709 = vlaneseq
        %v710 = vshrl.u32 %v709, 7
        %v711 = vsub.s32 %v708, %v710
        %v712 = vrot.slane %v681, %v711
        %v714 = vunpack.c.l.s4 1983009808
        %v715 = vunpack.c.0.s8 %v714
        %v716 = vlaneseq
        %v717 = vshrl.u32 %v716, 7
        %v718 = vsub.s32 %v715, %v717
        %v719 = vrot.slane %v705, %v718
        %v720 = vcombine.high %v712, %v712
        %v721 = vcombine.high %v719, %v719
        %v722 = vcombine.high %v682, %v682
        %v724 = vunpack.c.l.s4 1983009808
        %v725 = vunpack.c.0.s8 %v724
        %v726 = vlaneseq
        %v727 = vshrl.u32 %v726, 7
        %v728 = vsub.s32 %v725, %v727
        %v729 = vrot.slane %v682, %v728
        %v731 = vunpack.c.l.s4 1983009808
        %v732 = vunpack.c.0.s8 %v731
        %v733 = vlaneseq
        %v734 = vshrl.u32 %v733, 7
        %v735 = vsub.s32 %v732, %v734
        %v736 = vrot.slane %v722, %v735
        %v737 = vcombine.high %v729, %v729
        %v738 = vcombine.high %v736, %v736
        %v739 = vcombine.high %v683, %v683
        %v741 = vunpack.c.l.s4 1983009808
        %v742 = vunpack.c.0.s8 %v741
        %v743 = vlaneseq
        %v744 = vshrl.u32 %v743, 7
        %v745 = vsub.s32 %v742, %v744
        %v746 = vrot.slane %v683, %v745
        %v748 = vunpack.c.l.s4 1983009808
        %v749 = vunpack.c.0.s8 %v748
        %v750 = vlaneseq
        %v751 = vshrl.u32 %v750, 7
        %v752 = vsub.s32 %v749, %v751
        %v753 = vrot.slane %v739, %v752
        %v754 = vcombine.high %v746, %v746
        %v755 = vcombine.high %v753, %v753
        %v772 = vrot.slane %v695, 7
        %v773 = vrot.slane %v772, 2
        %v774 = vrot.slane %v703, 7
        %v775 = vrot.slane %v774, 2
        %v776 = vrot.slane %v702, 7
        %v777 = vrot.slane %v776, 2
        %v778 = vrot.slane %v704, 7
        %v779 = vrot.slane %v778, 2
        %v780 = vrot.slane %v712, 7
        %v781 = vrot.slane %v780, 2
        %v782 = vrot.slane %v720, 7
        %v783 = vrot.slane %v782, 2
        %v784 = vrot.slane %v719, 7
        %v785 = vrot.slane %v784, 2
        %v786 = vrot.slane %v721, 7
        %v787 = vrot.slane %v786, 2
        %v788 = vrot.slane %v729, 7
        %v789 = vrot.slane %v788, 2
        %v790 = vrot.slane %v737, 7
        %v791 = vrot.slane %v790, 2
        %v792 = vrot.slane %v736, 7
        %v793 = vrot.slane %v792, 2
        %v794 = vrot.slane %v738, 7
        %v795 = vrot.slane %v794, 2
        %v796 = vrot.slane %v746, 7
        %v797 = vrot.slane %v796, 2
        %v798 = vrot.slane %v754, 7
        %v799 = vrot.slane %v798, 2
        %v800 = vrot.slane %v753, 7
        %v801 = vrot.slane %v800, 2
        %v802 = vrot.slane %v755, 7
        %v803 = vrot.slane %v802, 2
        %v820 = vmax.f32 %v695, %v773
        %v821 = vmax.f32 %v703, %v775
        %v822 = vmax.f32 %v702, %v777
        %v823 = vmax.f32 %v704, %v779
        %v824 = vmax.f32 %v712, %v781
        %v825 = vmax.f32 %v720, %v783
        %v826 = vmax.f32 %v719, %v785
        %v827 = vmax.f32 %v721, %v787
        %v828 = vmax.f32 %v729, %v789
        %v829 = vmax.f32 %v737, %v791
        %v830 = vmax.f32 %v736, %v793
        %v831 = vmax.f32 %v738, %v795
        %v832 = vmax.f32 %v746, %v797
        %v833 = vmax.f32 %v754, %v799
        %v834 = vmax.f32 %v753, %v801
        %v835 = vmax.f32 %v755, %v803
        %v844 = vlaneseq
        %v845 = vshrl.u32 %v844, 7
        %v846 = vsub.s32 0, %v845
        %v847 = vrot.slane %v820, %v846
        %v848 = vlaneseq
        %v849 = vshrl.u32 %v848, 7
        %v850 = vsub.s32 0, %v849
        %v851 = vrot.slane %v822, %v850
        %v852 = vlaneseq
        %v853 = vshrl.u32 %v852, 7
        %v854 = vsub.s32 0, %v853
        %v855 = vrot.slane %v824, %v854
        %v856 = vlaneseq
        %v857 = vshrl.u32 %v856, 7
        %v858 = vsub.s32 0, %v857
        %v859 = vrot.slane %v826, %v858
        %v860 = vlaneseq
        %v861 = vshrl.u32 %v860, 7
        %v862 = vsub.s32 0, %v861
        %v863 = vrot.slane %v828, %v862
        %v864 = vlaneseq
        %v865 = vshrl.u32 %v864, 7
        %v866 = vsub.s32 0, %v865
        %v867 = vrot.slane %v830, %v866
        %v868 = vlaneseq
        %v869 = vshrl.u32 %v868, 7
        %v870 = vsub.s32 0, %v869
        %v871 = vrot.slane %v832, %v870
        %v872 = vlaneseq
        %v873 = vshrl.u32 %v872, 7
        %v874 = vsub.s32 0, %v873
        %v875 = vrot.slane %v834, %v874
        %v884 = vsel %vm443, 0.0, %v847
        %v885 = vsel %vm443, 0.0, %v851
        %v886 = vsel %vm443, 0.0, %v855
        %v887 = vsel %vm443, 0.0, %v859
        %v888 = vsel %vm443, 0.0, %v863
        %v889 = vsel %vm443, 0.0, %v867
        %v890 = vsel %vm443, 0.0, %v871
        %v891 = vsel %vm443, 0.0, %v875
        %v892 = vsel %vm443, %v821, 0.0
        %v893 = vsel %vm443, %v823, 0.0
        %v894 = vsel %vm443, %v825, 0.0
        %v895 = vsel %vm443, %v827, 0.0
        %v896 = vsel %vm443, %v829, 0.0
        %v897 = vsel %vm443, %v831, 0.0
        %v898 = vsel %vm443, %v833, 0.0
        %v899 = vsel %vm443, %v835, 0.0
        %v908 = vlaneseq
        %v909 = vshrl.u32 %v908, 7
        %v910 = vsub.s32 0, %v909
        %v911 = vrot.slane %v821, %v910
        %v912 = vlaneseq
        %v913 = vshrl.u32 %v912, 7
        %v914 = vsub.s32 0, %v913
        %v915 = vrot.slane %v823, %v914
        %v916 = vlaneseq
        %v917 = vshrl.u32 %v916, 7
        %v918 = vsub.s32 0, %v917
        %v919 = vrot.slane %v825, %v918
        %v920 = vlaneseq
        %v921 = vshrl.u32 %v920, 7
        %v922 = vsub.s32 0, %v921
        %v923 = vrot.slane %v827, %v922
        %v924 = vlaneseq
        %v925 = vshrl.u32 %v924, 7
        %v926 = vsub.s32 0, %v925
        %v927 = vrot.slane %v829, %v926
        %v928 = vlaneseq
        %v929 = vshrl.u32 %v928, 7
        %v930 = vsub.s32 0, %v929
        %v931 = vrot.slane %v831, %v930
        %v932 = vlaneseq
        %v933 = vshrl.u32 %v932, 7
        %v934 = vsub.s32 0, %v933
        %v935 = vrot.slane %v833, %v934
        %v936 = vlaneseq
        %v937 = vshrl.u32 %v936, 7
        %v938 = vsub.s32 0, %v937
        %v939 = vrot.slane %v835, %v938
        %vm940 = vcmask 1041409
        %v941 = vsel %vm940, %v911, %v847
        %v942 = vsel %vm940, %v915, %v851
        %v943 = vsel %vm940, %v919, %v855
        %v944 = vsel %vm940, %v923, %v859
        %v945 = vsel %vm940, %v927, %v863
        %v946 = vsel %vm940, %v931, %v867
        %v947 = vsel %vm940, %v935, %v871
        %v948 = vsel %vm940, %v939, %v875
        %v965 = vcombine.low %v884, %v941
        %v967 = vunpack.c.l.s4 1983009808
        %v968 = vunpack.c.0.s8 %v967
        %v969 = vlaneseq
        %v970 = vshrl.u32 %v969, 7
        %v971 = vsub.s32 %v968, %v970
        %v972 = vrot.slane %v965, %v971
        %v974 = vunpack.c.l.s4 1983009808
        %v975 = vunpack.c.0.s8 %v974
        %v976 = vlaneseq
        %v977 = vshrl.u32 %v976, 7
        %v978 = vsub.s32 %v975, %v977
        %v979 = vrot.slane %v892, %v978
        %v980 = vcombine.low %v972, %v979
        %v981 = vcombine.low %v885, %v942
        %v983 = vunpack.c.l.s4 1983009808
        %v984 = vunpack.c.0.s8 %v983
        %v985 = vlaneseq
        %v986 = vshrl.u32 %v985, 7
        %v987 = vsub.s32 %v984, %v986
        %v988 = vrot.slane %v981, %v987
        %v990 = vunpack.c.l.s4 1983009808
        %v991 = vunpack.c.0.s8 %v990
        %v992 = vlaneseq
        %v993 = vshrl.u32 %v992, 7
        %v994 = vsub.s32 %v991, %v993
        %v995 = vrot.slane %v893, %v994
        %v996 = vcombine.low %v988, %v995
        %v997 = vcombine.low %v886, %v943
        %v999 = vunpack.c.l.s4 1983009808
        %v1000 = vunpack.c.0.s8 %v999
        %v1001 = vlaneseq
        %v1002 = vshrl.u32 %v1001, 7
        %v1003 = vsub.s32 %v1000, %v1002
        %v1004 = vrot.slane %v997, %v1003
        %v1006 = vunpack.c.l.s4 1983009808
        %v1007 = vunpack.c.0.s8 %v1006
        %v1008 = vlaneseq
        %v1009 = vshrl.u32 %v1008, 7
        %v1010 = vsub.s32 %v1007, %v1009
        %v1011 = vrot.slane %v894, %v1010
        %v1012 = vcombine.low %v1004, %v1011
        %v1013 = vcombine.low %v887, %v944
        %v1015 = vunpack.c.l.s4 1983009808
        %v1016 = vunpack.c.0.s8 %v1015
        %v1017 = vlaneseq
        %v1018 = vshrl.u32 %v1017, 7
        %v1019 = vsub.s32 %v1016, %v1018
        %v1020 = vrot.slane %v1013, %v1019
        %v1022 = vunpack.c.l.s4 1983009808
        %v1023 = vunpack.c.0.s8 %v1022
        %v1024 = vlaneseq
        %v1025 = vshrl.u32 %v1024, 7
        %v1026 = vsub.s32 %v1023, %v1025
        %v1027 = vrot.slane %v895, %v1026
        %v1028 = vcombine.low %v1020, %v1027
        %v1029 = vcombine.low %v888, %v945
        %v1031 = vunpack.c.l.s4 1983009808
        %v1032 = vunpack.c.0.s8 %v1031
        %v1033 = vlaneseq
        %v1034 = vshrl.u32 %v1033, 7
        %v1035 = vsub.s32 %v1032, %v1034
        %v1036 = vrot.slane %v1029, %v1035
        %v1038 = vunpack.c.l.s4 1983009808
        %v1039 = vunpack.c.0.s8 %v1038
        %v1040 = vlaneseq
        %v1041 = vshrl.u32 %v1040, 7
        %v1042 = vsub.s32 %v1039, %v1041
        %v1043 = vrot.slane %v896, %v1042
        %v1044 = vcombine.low %v1036, %v1043
        %v1045 = vcombine.low %v889, %v946
        %v1047 = vunpack.c.l.s4 1983009808
        %v1048 = vunpack.c.0.s8 %v1047
        %v1049 = vlaneseq
        %v1050 = vshrl.u32 %v1049, 7
        %v1051 = vsub.s32 %v1048, %v1050
        %v1052 = vrot.slane %v1045, %v1051
        %v1054 = vunpack.c.l.s4 1983009808
        %v1055 = vunpack.c.0.s8 %v1054
        %v1056 = vlaneseq
        %v1057 = vshrl.u32 %v1056, 7
        %v1058 = vsub.s32 %v1055, %v1057
        %v1059 = vrot.slane %v897, %v1058
        %v1060 = vcombine.low %v1052, %v1059
        %v1061 = vcombine.low %v890, %v947
        %v1063 = vunpack.c.l.s4 1983009808
        %v1064 = vunpack.c.0.s8 %v1063
        %v1065 = vlaneseq
        %v1066 = vshrl.u32 %v1065, 7
        %v1067 = vsub.s32 %v1064, %v1066
        %v1068 = vrot.slane %v1061, %v1067
        %v1070 = vunpack.c.l.s4 1983009808
        %v1071 = vunpack.c.0.s8 %v1070
        %v1072 = vlaneseq
        %v1073 = vshrl.u32 %v1072, 7
        %v1074 = vsub.s32 %v1071, %v1073
        %v1075 = vrot.slane %v898, %v1074
        %v1076 = vcombine.low %v1068, %v1075
        %v1077 = vcombine.low %v891, %v948
        %v1079 = vunpack.c.l.s4 1983009808
        %v1080 = vunpack.c.0.s8 %v1079
        %v1081 = vlaneseq
        %v1082 = vshrl.u32 %v1081, 7
        %v1083 = vsub.s32 %v1080, %v1082
        %v1084 = vrot.slane %v1077, %v1083
        %v1086 = vunpack.c.l.s4 1983009808
        %v1087 = vunpack.c.0.s8 %v1086
        %v1088 = vlaneseq
        %v1089 = vshrl.u32 %v1088, 7
        %v1090 = vsub.s32 %v1087, %v1089
        %v1091 = vrot.slane %v899, %v1090
        %v1092 = vcombine.low %v1084, %v1091
        %v1093 = vcombine.low %v980, %v996
        %v1094 = vcombine.high %v980, %v996
        %v1095 = vcombine.low %v1012, %v1028
        %v1096 = vcombine.high %v1012, %v1028
        %v1098 = vunpack.c.l.s4 1983009808
        %v1099 = vunpack.c.0.s8 %v1098
        %v1100 = vlaneseq
        %v1101 = vshrl.u32 %v1100, 7
        %v1102 = vsub.s32 %v1099, %v1101
        %v1103 = vrot.slane %v1093, %v1102
        %v1105 = vunpack.c.l.s4 1983009808
        %v1106 = vunpack.c.0.s8 %v1105
        %v1107 = vlaneseq
        %v1108 = vshrl.u32 %v1107, 7
        %v1109 = vsub.s32 %v1106, %v1108
        %v1110 = vrot.slane %v1094, %v1109
        %v1112 = vunpack.c.l.s4 1983009808
        %v1113 = vunpack.c.0.s8 %v1112
        %v1114 = vlaneseq
        %v1115 = vshrl.u32 %v1114, 7
        %v1116 = vsub.s32 %v1113, %v1115
        %v1117 = vrot.slane %v1095, %v1116
        %v1119 = vunpack.c.l.s4 1983009808
        %v1120 = vunpack.c.0.s8 %v1119
        %v1121 = vlaneseq
        %v1122 = vshrl.u32 %v1121, 7
        %v1123 = vsub.s32 %v1120, %v1122
        %v1124 = vrot.slane %v1096, %v1123
        %v1125 = vcombine.low %v1103, %v1117
        %v1126 = vcombine.high %v1103, %v1117
        %v1127 = vcombine.low %v1110, %v1124
        %v1128 = vcombine.low %v1044, %v1060
        %v1129 = vcombine.high %v1044, %v1060
        %v1130 = vcombine.low %v1076, %v1092
        %v1131 = vcombine.high %v1076, %v1092
        %v1133 = vunpack.c.l.s4 1983009808
        %v1134 = vunpack.c.0.s8 %v1133
        %v1135 = vlaneseq
        %v1136 = vshrl.u32 %v1135, 7
        %v1137 = vsub.s32 %v1134, %v1136
        %v1138 = vrot.slane %v1128, %v1137
        %v1140 = vunpack.c.l.s4 1983009808
        %v1141 = vunpack.c.0.s8 %v1140
        %v1142 = vlaneseq
        %v1143 = vshrl.u32 %v1142, 7
        %v1144 = vsub.s32 %v1141, %v1143
        %v1145 = vrot.slane %v1129, %v1144
        %v1147 = vunpack.c.l.s4 1983009808
        %v1148 = vunpack.c.0.s8 %v1147
        %v1149 = vlaneseq
        %v1150 = vshrl.u32 %v1149, 7
        %v1151 = vsub.s32 %v1148, %v1150
        %v1152 = vrot.slane %v1130, %v1151
        %v1154 = vunpack.c.l.s4 1983009808
        %v1155 = vunpack.c.0.s8 %v1154
        %v1156 = vlaneseq
        %v1157 = vshrl.u32 %v1156, 7
        %v1158 = vsub.s32 %v1155, %v1157
        %v1159 = vrot.slane %v1131, %v1158
        %v1160 = vcombine.low %v1138, %v1152
        %v1161 = vcombine.high %v1138, %v1152
        %v1162 = vcombine.low %v1145, %v1159
        %v1169 = vpack.c.bf16 %v1160, %v1125
        %v1170 = vpack.c.bf16 %v1161, %v1126
        %v1171 = vpack.c.bf16 %v1162, %v1127
        %v1172 = vld [vmem:[#allocation7] sm:$0xff]
        %v1173 = vld [vmem:[#allocation7 + $0x8] sm:$0xff]
        %v1174 = vld [vmem:[#allocation7 + $0x10] sm:$0xff]
        %v1175 = vld [vmem:[#allocation7 + $0x18] sm:$0xff]
        %v1176 = vld [vmem:[#allocation7 + $0x20] sm:$0xff]
        %v1177 = vld [vmem:[#allocation7 + $0x28] sm:$0xff]
        %v1178 = vld [vmem:[#allocation7 + $0x30] sm:$0xff]
        %v1179 = vld [vmem:[#allocation7 + $0x38] sm:$0xff]
        %v1180 = vld [vmem:[#allocation7 + $0x40] sm:$0xff]
        %v1181 = vld [vmem:[#allocation7 + $0x48] sm:$0xff]
        %v1182 = vld [vmem:[#allocation7 + $0x50] sm:$0xff]
        %v1183 = vld [vmem:[#allocation7 + $0x58] sm:$0xff]
        %v1184 = vld [vmem:[#allocation7 + $0x60] sm:$0xff]
        %v1185 = vld [vmem:[#allocation7 + $0x68] sm:$0xff]
        %v1186 = vld [vmem:[#allocation7 + $0x70] sm:$0xff]
        %v1187 = vld [vmem:[#allocation7 + $0x78] sm:$0xff]
        %v1188 = vld [vmem:[#allocation7 + $0x80] sm:$0xff]
        %v1189 = vld [vmem:[#allocation7 + $0x88] sm:$0xff]
        %v1190 = vld [vmem:[#allocation7 + $0x90] sm:$0xff]
        %v1191 = vld [vmem:[#allocation7 + $0x98] sm:$0xff]
        %v1192 = vld [vmem:[#allocation7 + $0xa0] sm:$0xff]
        %v1193 = vld [vmem:[#allocation7 + $0xa8] sm:$0xff]
        %v1194 = vld [vmem:[#allocation7 + $0xb0] sm:$0xff]
        %v1195 = vld [vmem:[#allocation7 + $0xb8] sm:$0xff]
        %v1196 = vld [vmem:[#allocation7 + $0xc0] sm:$0xff]
        %v1197 = vld [vmem:[#allocation7 + $0xc8] sm:$0xff]
        %v1198 = vld [vmem:[#allocation7 + $0xd0] sm:$0xff]
        %v1199 = vld [vmem:[#allocation7 + $0xd8] sm:$0xff]
        %v1200 = vld [vmem:[#allocation7 + $0xe0] sm:$0xff]
        %v1201 = vld [vmem:[#allocation7 + $0xe8] sm:$0xff]
        %v1202 = vld [vmem:[#allocation7 + $0xf0] sm:$0xff]
        %v1203 = vld [vmem:[#allocation7 + $0xf8] sm:$0xff]
        %v1204 = vld [vmem:[#allocation7 + $0x100] sm:$0xff]
        %v1205 = vld [vmem:[#allocation7 + $0x108] sm:$0xff]
        %v1206 = vld [vmem:[#allocation7 + $0x110] sm:$0xff]
        %v1207 = vld [vmem:[#allocation7 + $0x118] sm:$0xff]
        %v1208 = vld [vmem:[#allocation7 + $0x120] sm:$0xff]
        %v1209 = vld [vmem:[#allocation7 + $0x128] sm:$0xff]
        %v1210 = vld [vmem:[#allocation7 + $0x130] sm:$0xff]
        %v1211 = vld [vmem:[#allocation7 + $0x138] sm:$0xff]
        %v1212 = vld [vmem:[#allocation7 + $0x140] sm:$0xff]
        %v1213 = vld [vmem:[#allocation7 + $0x148] sm:$0xff]
        %v1214 = vld [vmem:[#allocation7 + $0x150] sm:$0xff]
        %v1215 = vld [vmem:[#allocation7 + $0x158] sm:$0xff]
        %v1216 = vld [vmem:[#allocation7 + $0x160] sm:$0xff]
        %v1217 = vld [vmem:[#allocation7 + $0x168] sm:$0xff]
        %v1218 = vld [vmem:[#allocation7 + $0x170] sm:$0xff]
        %v1219 = vld [vmem:[#allocation7 + $0x178] sm:$0xff]
        %v1220 = vld [vmem:[%s4] sm:$0x3]
        %v1222 = vlaneseq
        %v1223 = vshrl.u32 %v1222, 7
        %v1224 = vsub.s32 0, %v1223
        %v1225 = vrot.slane %v1220, %v1224
        %v1226 = vlaneseq
        %v1227 = vshrl.u32 %v1226, 7
        %v1228 = vsub.s32 1, %v1227
        %v1229 = vrot.slane %v1220, %v1228
        %v1280 = vunpack.c.l.b16 %v1172
        %v1281 = vunpack.c.h.b16 %v1172
        %v1282 = vunpack.c.l.b16 %v1173
        %v1283 = vunpack.c.h.b16 %v1173
        %v1284 = vunpack.c.l.b16 %v1174
        %v1285 = vunpack.c.h.b16 %v1174
        %v1286 = vunpack.c.l.b16 %v1175
        %v1287 = vunpack.c.h.b16 %v1175
        %v1288 = vunpack.c.l.b16 %v1176
        %v1289 = vunpack.c.h.b16 %v1176
        %v1290 = vunpack.c.l.b16 %v1177
        %v1291 = vunpack.c.h.b16 %v1177
        %v1292 = vunpack.c.l.b16 %v1178
        %v1293 = vunpack.c.h.b16 %v1178
        %v1294 = vunpack.c.l.b16 %v1179
        %v1295 = vunpack.c.h.b16 %v1179
        %v1296 = vunpack.c.l.b16 %v1180
        %v1297 = vunpack.c.h.b16 %v1180
        %v1298 = vunpack.c.l.b16 %v1181
        %v1299 = vunpack.c.h.b16 %v1181
        %v1300 = vunpack.c.l.b16 %v1182
        %v1301 = vunpack.c.h.b16 %v1182
        %v1302 = vunpack.c.l.b16 %v1183
        %v1303 = vunpack.c.h.b16 %v1183
        %v1304 = vunpack.c.l.b16 %v1184
        %v1305 = vunpack.c.h.b16 %v1184
        %v1306 = vunpack.c.l.b16 %v1185
        %v1307 = vunpack.c.h.b16 %v1185
        %v1308 = vunpack.c.l.b16 %v1186
        %v1309 = vunpack.c.h.b16 %v1186
        %v1310 = vunpack.c.l.b16 %v1187
        %v1311 = vunpack.c.h.b16 %v1187
        %v1312 = vunpack.c.l.b16 %v1188
        %v1313 = vunpack.c.h.b16 %v1188
        %v1314 = vunpack.c.l.b16 %v1189
        %v1315 = vunpack.c.h.b16 %v1189
        %v1316 = vunpack.c.l.b16 %v1190
        %v1317 = vunpack.c.h.b16 %v1190
        %v1318 = vunpack.c.l.b16 %v1191
        %v1319 = vunpack.c.h.b16 %v1191
        %v1320 = vunpack.c.l.b16 %v1192
        %v1321 = vunpack.c.h.b16 %v1192
        %v1322 = vunpack.c.l.b16 %v1193
        %v1323 = vunpack.c.h.b16 %v1193
        %v1324 = vunpack.c.l.b16 %v1194
        %v1325 = vunpack.c.h.b16 %v1194
        %v1326 = vunpack.c.l.b16 %v1195
        %v1327 = vunpack.c.h.b16 %v1195
        %v1328 = vunpack.c.l.b16 %v1196
        %v1329 = vunpack.c.h.b16 %v1196
        %v1330 = vunpack.c.l.b16 %v1197
        %v1331 = vunpack.c.h.b16 %v1197
        %v1332 = vunpack.c.l.b16 %v1198
        %v1333 = vunpack.c.h.b16 %v1198
        %v1334 = vunpack.c.l.b16 %v1199
        %v1335 = vunpack.c.h.b16 %v1199
        %v1336 = vunpack.c.l.b16 %v1200
        %v1337 = vunpack.c.h.b16 %v1200
        %v1338 = vunpack.c.l.b16 %v1201
        %v1339 = vunpack.c.h.b16 %v1201
        %v1340 = vunpack.c.l.b16 %v1202
        %v1341 = vunpack.c.h.b16 %v1202
        %v1342 = vunpack.c.l.b16 %v1203
        %v1343 = vunpack.c.h.b16 %v1203
        %v1344 = vunpack.c.l.b16 %v1204
        %v1345 = vunpack.c.h.b16 %v1204
        %v1346 = vunpack.c.l.b16 %v1205
        %v1347 = vunpack.c.h.b16 %v1205
        %v1348 = vunpack.c.l.b16 %v1206
        %v1349 = vunpack.c.h.b16 %v1206
        %v1350 = vunpack.c.l.b16 %v1207
        %v1351 = vunpack.c.h.b16 %v1207
        %v1352 = vunpack.c.l.b16 %v1208
        %v1353 = vunpack.c.h.b16 %v1208
        %v1354 = vunpack.c.l.b16 %v1209
        %v1355 = vunpack.c.h.b16 %v1209
        %v1356 = vunpack.c.l.b16 %v1210
        %v1357 = vunpack.c.h.b16 %v1210
        %v1358 = vunpack.c.l.b16 %v1211
        %v1359 = vunpack.c.h.b16 %v1211
        %v1360 = vunpack.c.l.b16 %v1212
        %v1361 = vunpack.c.h.b16 %v1212
        %v1362 = vunpack.c.l.b16 %v1213
        %v1363 = vunpack.c.h.b16 %v1213
        %v1364 = vunpack.c.l.b16 %v1214
        %v1365 = vunpack.c.h.b16 %v1214
        %v1366 = vunpack.c.l.b16 %v1215
        %v1367 = vunpack.c.h.b16 %v1215
        %v1368 = vunpack.c.l.b16 %v1216
        %v1369 = vunpack.c.h.b16 %v1216
        %v1370 = vunpack.c.l.b16 %v1217
        %v1371 = vunpack.c.h.b16 %v1217
        %v1372 = vunpack.c.l.b16 %v1218
        %v1373 = vunpack.c.h.b16 %v1218
        %v1374 = vunpack.c.l.b16 %v1219
        %v1375 = vunpack.c.h.b16 %v1219
        %v1376 = vpack.c.b16 %v1282, %v1280
        %v1377 = vpack.c.b16 %v1283, %v1281
        %v1378 = vpack.c.b16 %v1286, %v1284
        %v1379 = vpack.c.b16 %v1287, %v1285
        %v1380 = vpack.c.b16 %v1290, %v1288
        %v1381 = vpack.c.b16 %v1291, %v1289
        %v1382 = vpack.c.b16 %v1294, %v1292
        %v1383 = vpack.c.b16 %v1295, %v1293
        %v1384 = vpack.c.b16 %v1298, %v1296
        %v1385 = vpack.c.b16 %v1299, %v1297
        %v1386 = vpack.c.b16 %v1302, %v1300
        %v1387 = vpack.c.b16 %v1303, %v1301
        %v1388 = vpack.c.b16 %v1306, %v1304
        %v1389 = vpack.c.b16 %v1307, %v1305
        %v1390 = vpack.c.b16 %v1310, %v1308
        %v1391 = vpack.c.b16 %v1311, %v1309
        %v1392 = vpack.c.b16 %v1314, %v1312
        %v1393 = vpack.c.b16 %v1315, %v1313
        %v1394 = vpack.c.b16 %v1318, %v1316
        %v1395 = vpack.c.b16 %v1319, %v1317
        %v1396 = vpack.c.b16 %v1322, %v1320
        %v1397 = vpack.c.b16 %v1323, %v1321
        %v1398 = vpack.c.b16 %v1326, %v1324
        %v1399 = vpack.c.b16 %v1327, %v1325
        %v1400 = vpack.c.b16 %v1330, %v1328
        %v1401 = vpack.c.b16 %v1331, %v1329
        %v1402 = vpack.c.b16 %v1334, %v1332
        %v1403 = vpack.c.b16 %v1335, %v1333
        %v1404 = vpack.c.b16 %v1338, %v1336
        %v1405 = vpack.c.b16 %v1339, %v1337
        %v1406 = vpack.c.b16 %v1342, %v1340
        %v1407 = vpack.c.b16 %v1343, %v1341
        %v1408 = vpack.c.b16 %v1346, %v1344
        %v1409 = vpack.c.b16 %v1347, %v1345
        %v1410 = vpack.c.b16 %v1350, %v1348
        %v1411 = vpack.c.b16 %v1351, %v1349
        %v1412 = vpack.c.b16 %v1354, %v1352
        %v1413 = vpack.c.b16 %v1355, %v1353
        %v1414 = vpack.c.b16 %v1358, %v1356
        %v1415 = vpack.c.b16 %v1359, %v1357
        %v1416 = vpack.c.b16 %v1362, %v1360
        %v1417 = vpack.c.b16 %v1363, %v1361
        %v1418 = vpack.c.b16 %v1366, %v1364
        %v1419 = vpack.c.b16 %v1367, %v1365
        %v1420 = vpack.c.b16 %v1370, %v1368
        %v1421 = vpack.c.b16 %v1371, %v1369
        %v1422 = vpack.c.b16 %v1374, %v1372
        %v1423 = vpack.c.b16 %v1375, %v1373
        %1472 = vmatprep.subr.bf16.mxu0 %v1391
        %1473 = vmatpush1.bf16.msra.mxu0 %v1390
        %1474 = vmatprep.subr.bf16.mxu0 %v1389
        %1475 = vmatpush1.bf16.msra.mxu0 %v1388
        %1476 = vmatprep.subr.bf16.mxu0 %v1387
        %1477 = vmatpush1.bf16.msra.mxu0 %v1386
        %1478 = vmatprep.subr.bf16.mxu0 %v1385
        %1479 = vmatpush1.bf16.msra.mxu0 %v1384
        %1480 = vmatprep.subr.bf16.mxu0 %v1383
        %1481 = vmatpush1.bf16.msra.mxu0 %v1382
        %1482 = vmatprep.subr.bf16.mxu0 %v1381
        %1483 = vmatpush1.bf16.msra.mxu0 %v1380
        %1484 = vmatprep.subr.bf16.mxu0 %v1379
        %1485 = vmatpush1.bf16.msra.mxu0 %v1378
        %1486 = vmatprep.subr.bf16.mxu0 %v1377
        %1487 = vmatpush1.bf16.msra.mxu0 %v1376
        %1488 = vmatprep.subr.bf16.mxu0 %v1407
        %1489 = vmatpush2.bf16.msra.mxu0 %v1406
        %1490 = vmatprep.subr.bf16.mxu0 %v1405
        %1491 = vmatpush2.bf16.msra.mxu0 %v1404
        %1492 = vmatprep.subr.bf16.mxu0 %v1403
        %1493 = vmatpush2.bf16.msra.mxu0 %v1402
        %1494 = vmatprep.subr.bf16.mxu0 %v1401
        %1495 = vmatpush2.bf16.msra.mxu0 %v1400
        %1496 = vmatprep.subr.bf16.mxu0 %v1399
        %1497 = vmatpush2.bf16.msra.mxu0 %v1398
        %1498 = vmatprep.subr.bf16.mxu0 %v1397
        %1499 = vmatpush2.bf16.msra.mxu0 %v1396
        %1500 = vmatprep.subr.bf16.mxu0 %v1395
        %1501 = vmatpush2.bf16.msra.mxu0 %v1394
        %1502 = vmatprep.subr.bf16.mxu0 %v1393
        %1503 = vmatpush2.bf16.msra.mxu0 %v1392
        %1504 = vmatprep.mubr.bf16.mxu0 %v1170
        %1505 = vmatmul.mubr.bf16.gmra.mxu0 %v1169
        %v1506 = vpop.f32.mrf.mxu0
        %v1507 = vadd.f32 %v1225, %v1506
        %v1508 = vpop.f32.mrf.mxu0
        %v1509 = vadd.f32 %v1229, %v1508
        %v1510 = vpop.f32.mrf.mxu0
        %v1511 = vadd.f32 %v1225, %v1510
        %v1512 = vpop.f32.mrf.mxu0
        %v1513 = vadd.f32 %v1229, %v1512
        %1514 = vdwg.mxu0
        %1515 = vmatprep.subr.bf16.mxu0 %v1423
        %1516 = vmatpush1.bf16.msra.mxu0 %v1422
        %1517 = vmatprep.subr.bf16.mxu0 %v1421
        %1518 = vmatpush1.bf16.msra.mxu0 %v1420
        %1519 = vmatprep.subr.bf16.mxu0 %v1419
        %1520 = vmatpush1.bf16.msra.mxu0 %v1418
        %1521 = vmatprep.subr.bf16.mxu0 %v1417
        %1522 = vmatpush1.bf16.msra.mxu0 %v1416
        %1523 = vmatprep.subr.bf16.mxu0 %v1415
        %1524 = vmatpush1.bf16.msra.mxu0 %v1414
        %1525 = vmatprep.subr.bf16.mxu0 %v1413
        %1526 = vmatpush1.bf16.msra.mxu0 %v1412
        %1527 = vmatprep.subr.bf16.mxu0 %v1411
        %1528 = vmatpush1.bf16.msra.mxu0 %v1410
        %1529 = vmatprep.subr.bf16.mxu0 %v1409
        %1530 = vmatpush1.bf16.msra.mxu0 %v1408
        %1531 = vmatprep.subr.bf16.mxu0 0
        %1532 = vmatpush2.bf16.msra.mxu0 0
        %1533 = vmatprep.subr.bf16.mxu0 0
        %1534 = vmatpush2.bf16.msra.mxu0 0
        %1535 = vmatprep.subr.bf16.mxu0 0
        %1536 = vmatpush2.bf16.msra.mxu0 0
        %1537 = vmatprep.subr.bf16.mxu0 0
        %1538 = vmatpush2.bf16.msra.mxu0 0
        %1539 = vmatprep.subr.bf16.mxu0 0
        %1540 = vmatpush2.bf16.msra.mxu0 0
        %1541 = vmatprep.subr.bf16.mxu0 0
        %1542 = vmatpush2.bf16.msra.mxu0 0
        %1543 = vmatprep.subr.bf16.mxu0 0
        %1544 = vmatpush2.bf16.msra.mxu0 0
        %1545 = vmatprep.subr.bf16.mxu0 0
        %1546 = vmatpush2.bf16.msra.mxu0 0
        %1547 = vmatprep.mubr.bf16.mxu0 0
        %1548 = vmatmul.mubr.bf16.gmra.mxu0 %v1171
        %v1549 = vpop.f32.mrf.mxu0
        %v1550 = vadd.f32 %v1507, %v1549
        %v1551 = vpop.f32.mrf.mxu0
        %v1552 = vadd.f32 %v1509, %v1551
        %v1553 = vpop.f32.mrf.mxu0
        %v1554 = vadd.f32 %v1511, %v1553
        %v1555 = vpop.f32.mrf.mxu0
        %v1556 = vadd.f32 %v1513, %v1555
        %1557 = vdwg.mxu0
        %v1558 = vmax.f32 %v1550, 0.0
        %v1559 = vmax.f32 %v1552, 0.0
        %v1560 = vmax.f32 %v1554, 0.0
        %v1561 = vmax.f32 %v1556, 0.0
        %v1566 = vcombine.low %v1558, %v1559
        %v1567 = vcombine.high %v1558, %v1559
        %v1569 = vunpack.c.l.s4 1983009808
        %v1570 = vunpack.c.0.s8 %v1569
        %v1571 = vlaneseq
        %v1572 = vshrl.u32 %v1571, 7
        %v1573 = vsub.s32 %v1570, %v1572
        %v1574 = vrot.slane %v1566, %v1573
        %v1576 = vunpack.c.l.s4 1983009808
        %v1577 = vunpack.c.0.s8 %v1576
        %v1578 = vlaneseq
        %v1579 = vshrl.u32 %v1578, 7
        %v1580 = vsub.s32 %v1577, %v1579
        %v1581 = vrot.slane %v1567, %v1580
        %v1582 = vcombine.high %v1574, %v1574
        %v1583 = vcombine.high %v1581, %v1581
        %v1584 = vcombine.low %v1560, %v1561
        %v1585 = vcombine.high %v1560, %v1561
        %v1587 = vunpack.c.l.s4 1983009808
        %v1588 = vunpack.c.0.s8 %v1587
        %v1589 = vlaneseq
        %v1590 = vshrl.u32 %v1589, 7
        %v1591 = vsub.s32 %v1588, %v1590
        %v1592 = vrot.slane %v1584, %v1591
        %v1594 = vunpack.c.l.s4 1983009808
        %v1595 = vunpack.c.0.s8 %v1594
        %v1596 = vlaneseq
        %v1597 = vshrl.u32 %v1596, 7
        %v1598 = vsub.s32 %v1595, %v1597
        %v1599 = vrot.slane %v1585, %v1598
        %v1600 = vcombine.high %v1592, %v1592
        %v1601 = vcombine.high %v1599, %v1599
        %v1610 = vrot.slane %v1574, 7
        %v1611 = vrot.slane %v1610, 2
        %v1612 = vrot.slane %v1582, 7
        %v1613 = vrot.slane %v1612, 2
        %v1614 = vrot.slane %v1581, 7
        %v1615 = vrot.slane %v1614, 2
        %v1616 = vrot.slane %v1583, 7
        %v1617 = vrot.slane %v1616, 2
        %v1618 = vrot.slane %v1592, 7
        %v1619 = vrot.slane %v1618, 2
        %v1620 = vrot.slane %v1600, 7
        %v1621 = vrot.slane %v1620, 2
        %v1622 = vrot.slane %v1599, 7
        %v1623 = vrot.slane %v1622, 2
        %v1624 = vrot.slane %v1601, 7
        %v1625 = vrot.slane %v1624, 2
        %v1634 = vmax.f32 %v1574, %v1611
        %v1635 = vmax.f32 %v1582, %v1613
        %v1636 = vmax.f32 %v1581, %v1615
        %v1637 = vmax.f32 %v1583, %v1617
        %v1638 = vmax.f32 %v1592, %v1619
        %v1639 = vmax.f32 %v1600, %v1621
        %v1640 = vmax.f32 %v1599, %v1623
        %v1641 = vmax.f32 %v1601, %v1625
        %v1650 = vlaneseq
        %v1651 = vshrl.u32 %v1650, 7
        %v1652 = vsub.s32 0, %v1651
        %v1653 = vrot.slane %v1634, %v1652
        %v1654 = vlaneseq
        %v1655 = vshrl.u32 %v1654, 7
        %v1656 = vsub.s32 2, %v1655
        %v1657 = vrot.slane %v1634, %v1656
        %v1658 = vlaneseq
        %v1659 = vshrl.u32 %v1658, 7
        %v1660 = vsub.s32 0, %v1659
        %v1661 = vrot.slane %v1635, %v1660
        %v1662 = vlaneseq
        %v1663 = vshrl.u32 %v1662, 7
        %v1664 = vsub.s32 2, %v1663
        %v1665 = vrot.slane %v1635, %v1664
        %v1666 = vlaneseq
        %v1667 = vshrl.u32 %v1666, 7
        %v1668 = vsub.s32 0, %v1667
        %v1669 = vrot.slane %v1636, %v1668
        %v1670 = vlaneseq
        %v1671 = vshrl.u32 %v1670, 7
        %v1672 = vsub.s32 2, %v1671
        %v1673 = vrot.slane %v1636, %v1672
        %v1674 = vlaneseq
        %v1675 = vshrl.u32 %v1674, 7
        %v1676 = vsub.s32 0, %v1675
        %v1677 = vrot.slane %v1637, %v1676
        %v1678 = vlaneseq
        %v1679 = vshrl.u32 %v1678, 7
        %v1680 = vsub.s32 2, %v1679
        %v1681 = vrot.slane %v1637, %v1680
        %v1682 = vlaneseq
        %v1683 = vshrl.u32 %v1682, 7
        %v1684 = vsub.s32 0, %v1683
        %v1685 = vrot.slane %v1638, %v1684
        %v1686 = vlaneseq
        %v1687 = vshrl.u32 %v1686, 7
        %v1688 = vsub.s32 2, %v1687
        %v1689 = vrot.slane %v1638, %v1688
        %v1690 = vlaneseq
        %v1691 = vshrl.u32 %v1690, 7
        %v1692 = vsub.s32 0, %v1691
        %v1693 = vrot.slane %v1639, %v1692
        %v1694 = vlaneseq
        %v1695 = vshrl.u32 %v1694, 7
        %v1696 = vsub.s32 2, %v1695
        %v1697 = vrot.slane %v1639, %v1696
        %v1698 = vlaneseq
        %v1699 = vshrl.u32 %v1698, 7
        %v1700 = vsub.s32 0, %v1699
        %v1701 = vrot.slane %v1640, %v1700
        %v1702 = vlaneseq
        %v1703 = vshrl.u32 %v1702, 7
        %v1704 = vsub.s32 2, %v1703
        %v1705 = vrot.slane %v1640, %v1704
        %v1706 = vlaneseq
        %v1707 = vshrl.u32 %v1706, 7
        %v1708 = vsub.s32 0, %v1707
        %v1709 = vrot.slane %v1641, %v1708
        %v1710 = vlaneseq
        %v1711 = vshrl.u32 %v1710, 7
        %v1712 = vsub.s32 2, %v1711
        %v1713 = vrot.slane %v1641, %v1712
        %v1730 = vpack.c.bf16 %v1653, %v1653
        %v1731 = vpack.c.bf16 %v1657, %v1657
        %v1732 = vpack.c.bf16 %v1661, %v1661
        %v1733 = vpack.c.bf16 %v1665, %v1665
        %v1734 = vpack.c.bf16 %v1669, %v1669
        %v1735 = vpack.c.bf16 %v1673, %v1673
        %v1736 = vpack.c.bf16 %v1677, %v1677
        %v1737 = vpack.c.bf16 %v1681, %v1681
        %v1738 = vpack.c.bf16 %v1685, %v1685
        %v1739 = vpack.c.bf16 %v1689, %v1689
        %v1740 = vpack.c.bf16 %v1693, %v1693
        %v1741 = vpack.c.bf16 %v1697, %v1697
        %v1742 = vpack.c.bf16 %v1701, %v1701
        %v1743 = vpack.c.bf16 %v1705, %v1705
        %v1744 = vpack.c.bf16 %v1709, %v1709
        %v1745 = vpack.c.bf16 %v1713, %v1713
        %v1746 = vld [vmem:[#allocation8] sm:$0xf]
        %v1747 = vld [vmem:[#allocation8 + $0x4] sm:$0xf]
        %v1748 = vld [vmem:[#allocation8 + $0x8] sm:$0xf]
        %v1749 = vld [vmem:[#allocation8 + $0xc] sm:$0xf]
        %v1750 = vld [vmem:[#allocation8 + $0x10] sm:$0xf]
        %v1751 = vld [vmem:[#allocation8 + $0x14] sm:$0xf]
        %v1752 = vld [vmem:[#allocation8 + $0x18] sm:$0xf]
        %v1753 = vld [vmem:[#allocation8 + $0x1c] sm:$0xf]
        %v1754 = vld [vmem:[#allocation8 + $0x20] sm:$0xf]
        %v1755 = vld [vmem:[#allocation8 + $0x24] sm:$0xf]
        %v1756 = vld [vmem:[#allocation8 + $0x28] sm:$0xf]
        %v1757 = vld [vmem:[#allocation8 + $0x2c] sm:$0xf]
        %v1758 = vld [vmem:[#allocation8 + $0x30] sm:$0xf]
        %v1759 = vld [vmem:[#allocation8 + $0x34] sm:$0xf]
        %v1760 = vld [vmem:[#allocation8 + $0x38] sm:$0xf]
        %v1761 = vld [vmem:[#allocation8 + $0x3c] sm:$0xf]
        %v1762 = vld [vmem:[#allocation8 + $0x40] sm:$0xf]
        %v1763 = vld [vmem:[#allocation8 + $0x44] sm:$0xf]
        %v1764 = vld [vmem:[#allocation8 + $0x48] sm:$0xf]
        %v1765 = vld [vmem:[#allocation8 + $0x4c] sm:$0xf]
        %v1766 = vld [vmem:[#allocation8 + $0x50] sm:$0xf]
        %v1767 = vld [vmem:[#allocation8 + $0x54] sm:$0xf]
        %v1768 = vld [vmem:[#allocation8 + $0x58] sm:$0xf]
        %v1769 = vld [vmem:[#allocation8 + $0x5c] sm:$0xf]
        %v1770 = vld [vmem:[#allocation8 + $0x60] sm:$0xf]
        %v1771 = vld [vmem:[#allocation8 + $0x64] sm:$0xf]
        %v1772 = vld [vmem:[#allocation8 + $0x68] sm:$0xf]
        %v1773 = vld [vmem:[#allocation8 + $0x6c] sm:$0xf]
        %v1774 = vld [vmem:[#allocation8 + $0x70] sm:$0xf]
        %v1775 = vld [vmem:[#allocation8 + $0x74] sm:$0xf]
        %v1776 = vld [vmem:[#allocation8 + $0x78] sm:$0xf]
        %v1777 = vld [vmem:[#allocation8 + $0x7c] sm:$0xf]
        %v1778 = vld [vmem:[%s6] sm:$0x1]
        %v1780 = vlaneseq
        %v1781 = vshrl.u32 %v1780, 7
        %v1782 = vsub.s32 0, %v1781
        %v1783 = vrot.slane %v1778, %v1782
        %v1801 = vunpack.c.l.b16 %v1730
        %v1802 = vunpack.c.l.b16 %v1731
        %v1803 = vunpack.c.l.b16 %v1732
        %v1804 = vunpack.c.l.b16 %v1733
        %v1805 = vunpack.c.l.b16 %v1734
        %v1806 = vunpack.c.l.b16 %v1735
        %v1807 = vunpack.c.l.b16 %v1736
        %v1808 = vunpack.c.l.b16 %v1737
        %v1809 = vunpack.c.l.b16 %v1738
        %v1810 = vunpack.c.l.b16 %v1739
        %v1811 = vunpack.c.l.b16 %v1740
        %v1812 = vunpack.c.l.b16 %v1741
        %v1813 = vunpack.c.l.b16 %v1742
        %v1814 = vunpack.c.l.b16 %v1743
        %v1815 = vunpack.c.l.b16 %v1744
        %v1816 = vunpack.c.l.b16 %v1745
        %v1817 = vrot.slane %v1803, 7
        %v1818 = vsel %vm940, %v1817, %v1801
        %v1819 = vrot.slane %v1805, 6
        %vm1820 = vcmask 1042434
        %v1821 = vsel %vm1820, %v1819, %v1818
        %v1822 = vrot.slane %v1807, 5
        %vm1823 = vcmask 1043459
        %v1824 = vsel %vm1823, %v1822, %v1821
        %v1825 = vrot.slane %v1809, 4
        %vm1826 = vcmask 1044484
        %v1827 = vsel %vm1826, %v1825, %v1824
        %v1828 = vrot.slane %v1811, 3
        %vm1829 = vcmask 1045509
        %v1830 = vsel %vm1829, %v1828, %v1827
        %v1831 = vrot.slane %v1813, 2
        %vm1832 = vcmask 1046534
        %v1833 = vsel %vm1832, %v1831, %v1830
        %v1834 = vrot.slane %v1815, 1
        %vm1835 = vcmask 1047559
        %v1836 = vsel %vm1835, %v1834, %v1833
        %v1837 = vrot.slane %v1804, 7
        %v1838 = vsel %vm940, %v1837, %v1802
        %v1839 = vrot.slane %v1806, 6
        %v1840 = vsel %vm1820, %v1839, %v1838
        %v1841 = vrot.slane %v1808, 5
        %v1842 = vsel %vm1823, %v1841, %v1840
        %v1843 = vrot.slane %v1810, 4
        %v1844 = vsel %vm1826, %v1843, %v1842
        %v1845 = vrot.slane %v1812, 3
        %v1846 = vsel %vm1829, %v1845, %v1844
        %v1847 = vrot.slane %v1814, 2
        %v1848 = vsel %vm1832, %v1847, %v1846
        %v1849 = vrot.slane %v1816, 1
        %v1850 = vsel %vm1835, %v1849, %v1848
        %v1851 = vpack.c.b16 %v1836, %v1836
        %v1852 = vpack.c.b16 %v1850, %v1850
        %v1887 = vunpack.c.l.b16 %v1746
        %v1888 = vunpack.c.l.b16 %v1747
        %v1889 = vunpack.c.l.b16 %v1748
        %v1890 = vunpack.c.l.b16 %v1749
        %v1891 = vunpack.c.l.b16 %v1750
        %v1892 = vunpack.c.l.b16 %v1751
        %v1893 = vunpack.c.l.b16 %v1752
        %v1894 = vunpack.c.l.b16 %v1753
        %v1895 = vunpack.c.l.b16 %v1754
        %v1896 = vunpack.c.l.b16 %v1755
        %v1897 = vunpack.c.l.b16 %v1756
        %v1898 = vunpack.c.l.b16 %v1757
        %v1899 = vunpack.c.l.b16 %v1758
        %v1900 = vunpack.c.l.b16 %v1759
        %v1901 = vunpack.c.l.b16 %v1760
        %v1902 = vunpack.c.l.b16 %v1761
        %v1903 = vunpack.c.l.b16 %v1762
        %v1904 = vunpack.c.l.b16 %v1763
        %v1905 = vunpack.c.l.b16 %v1764
        %v1906 = vunpack.c.l.b16 %v1765
        %v1907 = vunpack.c.l.b16 %v1766
        %v1908 = vunpack.c.l.b16 %v1767
        %v1909 = vunpack.c.l.b16 %v1768
        %v1910 = vunpack.c.l.b16 %v1769
        %v1911 = vunpack.c.l.b16 %v1770
        %v1912 = vunpack.c.l.b16 %v1771
        %v1913 = vunpack.c.l.b16 %v1772
        %v1914 = vunpack.c.l.b16 %v1773
        %v1915 = vunpack.c.l.b16 %v1774
        %v1916 = vunpack.c.l.b16 %v1775
        %v1917 = vunpack.c.l.b16 %v1776
        %v1918 = vunpack.c.l.b16 %v1777
        %v1919 = vpack.c.b16 %v1888, %v1887
        %v1920 = vpack.c.b16 %v1890, %v1889
        %v1921 = vpack.c.b16 %v1892, %v1891
        %v1922 = vpack.c.b16 %v1894, %v1893
        %v1923 = vpack.c.b16 %v1896, %v1895
        %v1924 = vpack.c.b16 %v1898, %v1897
        %v1925 = vpack.c.b16 %v1900, %v1899
        %v1926 = vpack.c.b16 %v1902, %v1901
        %v1927 = vpack.c.b16 %v1904, %v1903
        %v1928 = vpack.c.b16 %v1906, %v1905
        %v1929 = vpack.c.b16 %v1908, %v1907
        %v1930 = vpack.c.b16 %v1910, %v1909
        %v1931 = vpack.c.b16 %v1912, %v1911
        %v1932 = vpack.c.b16 %v1914, %v1913
        %v1933 = vpack.c.b16 %v1916, %v1915
        %v1934 = vpack.c.b16 %v1918, %v1917
        %1951 = vmatprep.subr.bf16.mxu0 0
        %1952 = vmatpush1.bf16.msra.mxu0 %v1926
        %1953 = vmatprep.subr.bf16.mxu0 0
        %1954 = vmatpush1.bf16.msra.mxu0 %v1925
        %1955 = vmatprep.subr.bf16.mxu0 0
        %1956 = vmatpush1.bf16.msra.mxu0 %v1924
        %1957 = vmatprep.subr.bf16.mxu0 0
        %1958 = vmatpush1.bf16.msra.mxu0 %v1923
        %1959 = vmatprep.subr.bf16.mxu0 0
        %1960 = vmatpush1.bf16.msra.mxu0 %v1922
        %1961 = vmatprep.subr.bf16.mxu0 0
        %1962 = vmatpush1.bf16.msra.mxu0 %v1921
        %1963 = vmatprep.subr.bf16.mxu0 0
        %1964 = vmatpush1.bf16.msra.mxu0 %v1920
        %1965 = vmatprep.subr.bf16.mxu0 0
        %1966 = vmatpush1.bf16.msra.mxu0 %v1919
        %1967 = vmatprep.subr.bf16.mxu0 0
        %1968 = vmatpush2.bf16.msra.mxu0 %v1934
        %1969 = vmatprep.subr.bf16.mxu0 0
        %1970 = vmatpush2.bf16.msra.mxu0 %v1933
        %1971 = vmatprep.subr.bf16.mxu0 0
        %1972 = vmatpush2.bf16.msra.mxu0 %v1932
        %1973 = vmatprep.subr.bf16.mxu0 0
        %1974 = vmatpush2.bf16.msra.mxu0 %v1931
        %1975 = vmatprep.subr.bf16.mxu0 0
        %1976 = vmatpush2.bf16.msra.mxu0 %v1930
        %1977 = vmatprep.subr.bf16.mxu0 0
        %1978 = vmatpush2.bf16.msra.mxu0 %v1929
        %1979 = vmatprep.subr.bf16.mxu0 0
        %1980 = vmatpush2.bf16.msra.mxu0 %v1928
        %1981 = vmatprep.subr.bf16.mxu0 0
        %1982 = vmatpush2.bf16.msra.mxu0 %v1927
        %1983 = vmatprep.mubr.bf16.mxu0 %v1852
        %1984 = vmatmul.mubr.bf16.gmra.mxu0 %v1851
        %v1985 = vpop.f32.mrf.mxu0
        %v1986 = vadd.f32 %v1783, %v1985
        %v1987 = vpop.f32.mrf.mxu0
        %v1988 = vpop.f32.mrf.mxu0
        %v1989 = vpop.f32.mrf.mxu0
        %1990 = vdwg.mxu0
        %v1991 = vmax.f32 %v1986, 0.0
        %v1992 = vpack.c.bf16 %v1991, %v1991
        %v1993 = vld [vmem:[#allocation10] sm:$0xf]
        %v1994 = vld [vmem:[#allocation10 + $0x4] sm:$0xf]
        %v1995 = vld [vmem:[#allocation10 + $0x8] sm:$0xf]
        %v1996 = vld [vmem:[#allocation10 + $0xc] sm:$0xf]
        %v1997 = vld [vmem:[#allocation10 + $0x10] sm:$0xf]
        %v1998 = vld [vmem:[#allocation10 + $0x14] sm:$0xf]
        %v1999 = vld [vmem:[#allocation10 + $0x18] sm:$0xf]
        %v2000 = vld [vmem:[#allocation10 + $0x1c] sm:$0xf]
        %v2001 = vld [vmem:[#allocation10 + $0x20] sm:$0xf]
        %v2002 = vld [vmem:[#allocation10 + $0x24] sm:$0xf]
        %v2003 = vld [vmem:[#allocation10 + $0x28] sm:$0xf]
        %v2004 = vld [vmem:[#allocation10 + $0x2c] sm:$0xf]
        %v2005 = vld [vmem:[#allocation10 + $0x30] sm:$0xf]
        %v2006 = vld [vmem:[#allocation10 + $0x34] sm:$0xf]
        %v2007 = vld [vmem:[#allocation10 + $0x38] sm:$0xf]
        %v2008 = vld [vmem:[#allocation10 + $0x3c] sm:$0xf]
        %v2009 = vld [vmem:[%s8] sm:$0x1]
        %v2011 = vlaneseq
        %v2012 = vshrl.u32 %v2011, 7
        %v2013 = vsub.s32 0, %v2012
        %v2014 = vrot.slane %v2009, %v2013
        %v2032 = vunpack.c.l.b16 %v1993
        %v2033 = vunpack.c.l.b16 %v1994
        %v2034 = vunpack.c.l.b16 %v1995
        %v2035 = vunpack.c.l.b16 %v1996
        %v2036 = vunpack.c.l.b16 %v1997
        %v2037 = vunpack.c.l.b16 %v1998
        %v2038 = vunpack.c.l.b16 %v1999
        %v2039 = vunpack.c.l.b16 %v2000
        %v2040 = vunpack.c.l.b16 %v2001
        %v2041 = vunpack.c.l.b16 %v2002
        %v2042 = vunpack.c.l.b16 %v2003
        %v2043 = vunpack.c.l.b16 %v2004
        %v2044 = vunpack.c.l.b16 %v2005
        %v2045 = vunpack.c.l.b16 %v2006
        %v2046 = vunpack.c.l.b16 %v2007
        %v2047 = vunpack.c.l.b16 %v2008
        %v2048 = vpack.c.b16 %v2033, %v2032
        %v2049 = vpack.c.b16 %v2035, %v2034
        %v2050 = vpack.c.b16 %v2037, %v2036
        %v2051 = vpack.c.b16 %v2039, %v2038
        %v2052 = vpack.c.b16 %v2041, %v2040
        %v2053 = vpack.c.b16 %v2043, %v2042
        %v2054 = vpack.c.b16 %v2045, %v2044
        %v2055 = vpack.c.b16 %v2047, %v2046
        %2064 = vmatprep.subr.bf16.mxu0 0
        %2065 = vmatpush1.bf16.msra.mxu0 %v2055
        %2066 = vmatprep.subr.bf16.mxu0 0
        %2067 = vmatpush1.bf16.msra.mxu0 %v2054
        %2068 = vmatprep.subr.bf16.mxu0 0
        %2069 = vmatpush1.bf16.msra.mxu0 %v2053
        %2070 = vmatprep.subr.bf16.mxu0 0
        %2071 = vmatpush1.bf16.msra.mxu0 %v2052
        %2072 = vmatprep.subr.bf16.mxu0 0
        %2073 = vmatpush1.bf16.msra.mxu0 %v2051
        %2074 = vmatprep.subr.bf16.mxu0 0
        %2075 = vmatpush1.bf16.msra.mxu0 %v2050
        %2076 = vmatprep.subr.bf16.mxu0 0
        %2077 = vmatpush1.bf16.msra.mxu0 %v2049
        %2078 = vmatprep.subr.bf16.mxu0 0
        %2079 = vmatpush1.bf16.msra.mxu0 %v2048
        %2080 = vmatprep.subr.bf16.mxu0 0
        %2081 = vmatpush2.bf16.msra.mxu0 0
        %2082 = vmatprep.subr.bf16.mxu0 0
        %2083 = vmatpush2.bf16.msra.mxu0 0
        %2084 = vmatprep.subr.bf16.mxu0 0
        %2085 = vmatpush2.bf16.msra.mxu0 0
        %2086 = vmatprep.subr.bf16.mxu0 0
        %2087 = vmatpush2.bf16.msra.mxu0 0
        %2088 = vmatprep.subr.bf16.mxu0 0
        %2089 = vmatpush2.bf16.msra.mxu0 0
        %2090 = vmatprep.subr.bf16.mxu0 0
        %2091 = vmatpush2.bf16.msra.mxu0 0
        %2092 = vmatprep.subr.bf16.mxu0 0
        %2093 = vmatpush2.bf16.msra.mxu0 0
        %2094 = vmatprep.subr.bf16.mxu0 0
        %2095 = vmatpush2.bf16.msra.mxu0 0
        %2096 = vmatprep.mubr.bf16.mxu0 0
        %2097 = vmatmul.mubr.bf16.gmra.mxu0 %v1992
        %v2098 = vpop.f32.mrf.mxu0
        %v2099 = vadd.f32 %v2014, %v2098
        %v2100 = vpop.f32.mrf.mxu0
        %v2101 = vpop.f32.mrf.mxu0
        %v2102 = vpop.f32.mrf.mxu0
        %2103 = vdwg.mxu0
        %2104 = vst [vmem:[%s408] sm:$0xff] %v2099
        %s2105 = sand.u32 %s230, 1
        %s2106 = scalar_lea.sflag [#allocation4], %s2105
        %s2107 = sand.u32 %s230, 1
        %s2108 = smul.addr %s2107, 8
        %s2109 = scalar_lea.vmem [#allocation11], %s2108
        // Predicated region
        $region77: #{tpu_custom_call.1} parent=55 // pred_check
          %p2110 = pneg %p240
        $region78: #{tpu_custom_call.1} parent=55 // pred_check_branch
          %2112 = sbr.rel (%p2110) target = $region80
        $region79: #{tpu_custom_call.1} parent=55 // pred_region
          %s2114 = ssub.s32 128, 128
          %2115 = vsyncadd %s2106, %s2114
          %s2116 = smul.addr %s28, 128
          %s2117 = scalar_lea.hbm %s9, %s2116
          %s2119 = sshll.u32 %s2109, 4
          %s2120 = int_to_ptr.vmem [resolvable:$true] %s2119
          %2122 = dma.vmem_to_hbm [thread:$0]  %s2120, 128, %s2117, %s2106
        $region80: #{tpu_custom_call.1} parent=55 // pred_fallthru
          _
      $region56: #{tpu_custom_call.1} parent=5 // pred_fallthru
        _
      %p2123 = scmp.le.s32.totalorder 2, %s23
      // Predicated region
      $region81: #{tpu_custom_call.1} parent=5 // pred_check
        %p2124 = pneg %p2123
      $region82: #{tpu_custom_call.1} parent=5 // pred_check_branch
        %2126 = sbr.rel (%p2124) target = $region84
      $region83: #{tpu_custom_call.1} parent=5 // pred_region
        %s2127 = ssub.s32 %s23, 2
        // Predicated region
        $region85: #{tpu_custom_call.1} parent=83 // pred_check
          %p2128 = pneg %p246
        $region86: #{tpu_custom_call.1} parent=83 // pred_check_branch
          %2130 = sbr.rel (%p2128) target = $region88
        $region87: #{tpu_custom_call.1} parent=83 // pred_region
          %s2131 = sand.u32 %s231, 1
          %s2132 = scalar_lea.sflag [#allocation4], %s2131
          %s2133 = sand.u32 %s231, 1
          %s2134 = smul.addr %s2133, 8
          %s2135 = scalar_lea.vmem [#allocation11], %s2134
          %2136 = dma.done %s2132, 128
        $region88: #{tpu_custom_call.1} parent=83 // pred_fallthru
          _
      $region84: #{tpu_custom_call.1} parent=5 // pred_fallthru
        _
    $region6: #{tpu_custom_call.1} parent=1 // loop_footer
      %s27 = sadd.s32 1, %s23
    $region7: #{tpu_custom_call.1} parent=1 // loop_footer_branch
      %22 = sbr.rel target = $region3
    $region8: #{tpu_custom_call.1} parent=1 // loop_exit
      _
    %2137 = vsyncpa [#allocation3], 1
    %s2138 = scalar_lea.sflag [#allocation3], 1
    %2139 = vsyncpa %s2138, 1
    %2140 = vsyncpa [#allocation6], 1
    %2141 = vsyncpa [#allocation9], 1
    %2142 = vsyncpa [#allocation4], 1
    %s2143 = scalar_lea.sflag [#allocation4], 1
    %2144 = vsyncpa %s2143, 1

</llo_original>
